<compile_context>
chip_gen: v5e
topology: v5e:2x2
jax: 0.10.0
libtpu: 0.0.40
codegen_flags: <defaults>
</compile_context>

<pallas_src>
import functools
import math

import jax
import jax.numpy as jnp
from jax import lax
from jax.experimental import pallas as pl
from jax.experimental.pallas import tpu as pltpu


# --------------------------------------------------------------------------- #
# Helpers
# --------------------------------------------------------------------------- #
def _ln(z, g, b, eps=1e-5):
    mu = jnp.mean(z, axis=-1, keepdims=True)
    var = jnp.mean(jnp.square(z - mu), axis=-1, keepdims=True)
    return (z - mu) * lax.rsqrt(var + eps) * g + b


def _pick_ff_chunk(f):
    if f <= 512:
        return f
    for c in (512, 256, 128):
        if f % c == 0:
            return c
    return f


# --------------------------------------------------------------------------- #
# Fused Pallas kernel: all encoder layers + final LayerNorm
# --------------------------------------------------------------------------- #
def fused_encoder_kernel(x_ref, mask_ref,
                         wqkv_ref, bqkv_ref, wo_ref, bo_ref,
                         g1_ref, be1_ref,
                         w1_ref, b1_ref, w2_ref, b2_ref,
                         g2_ref, be2_ref,
                         gf_ref, bf_ref,
                         o_ref,
                         act_ref, ctx_ref,
                         *, num_heads, ff_chunk):
    layer = pl.program_id(1)
    n_layers = pl.num_programs(1)

    # Layer 0: load this batch element's activation into the resident VMEM scratch.
    @pl.when(layer == 0)
    def _():
        act_ref[...] = x_ref[0].astype(jnp.float32)

    x = act_ref[...]                               # (S, D), f32, carried across layers
    S, D = x.shape
    H = num_heads
    Dh = D // H
    cd = wqkv_ref.dtype                            # matmul compute dtype (bf16)
    scale = 1.0 / math.sqrt(Dh)

    # ---- self-attention --------------------------------------------------- #
    xb = x.astype(cd)
    # Three lane-dense (S,D)@(D,D) projections (no slicing of a fused 3D-wide QKV).
    q = jnp.dot(xb, wqkv_ref[0, 0], preferred_element_type=jnp.float32) + bqkv_ref[0, 0]
    k = jnp.dot(xb, wqkv_ref[0, 1], preferred_element_type=jnp.float32) + bqkv_ref[0, 1]
    v = jnp.dot(xb, wqkv_ref[0, 2], preferred_element_type=jnp.float32) + bqkv_ref[0, 2]
    q = q * scale                                  # fold 1/sqrt(Dh) into q once
    qc, kc, vc = q.astype(cd), k.astype(cd), v.astype(cd)

    # Hoisted additive key-padding mask, broadcast to (S, S) once (not per head).
    bias2d = jnp.broadcast_to(mask_ref[0], (S, S)).astype(jnp.float32)

    for h in range(H):
        qh = qc[:, h * Dh:(h + 1) * Dh]
        kh = kc[:, h * Dh:(h + 1) * Dh]
        vh = vc[:, h * Dh:(h + 1) * Dh]
        s = lax.dot_general(qh, kh, (((1,), (1,)), ((), ())),
                            preferred_element_type=jnp.float32) + bias2d
        s = s - jnp.max(s, axis=-1, keepdims=True)
        p = jnp.exp(s)
        p = p * pl.reciprocal(jnp.sum(p, axis=-1, keepdims=True), approx=True)
        head = jnp.dot(p.astype(cd), vh, preferred_element_type=jnp.float32)
        ctx_ref[:, h * Dh:(h + 1) * Dh] = head     # assemble concatenated heads once

    # Single concatenated-heads output projection: (S,D) @ (D,D), contraction = D.
    attn = jnp.dot(ctx_ref[...].astype(cd), wo_ref[0],
                   preferred_element_type=jnp.float32) + bo_ref[0, 0]

    # ---- add & norm 1 ------------------------------------------------------ #
    y = _ln(x + attn, g1_ref[0, 0], be1_ref[0, 0])

    # ---- feed-forward (linear1 -> relu -> linear2), tiled over hidden dim F - #
    yb = y.astype(cd)
    F = w1_ref.shape[-1]
    ff = jnp.zeros((S, D), jnp.float32)
    for c0 in range(0, F, ff_chunk):
        h1 = jnp.dot(yb, w1_ref[0, :, c0:c0 + ff_chunk],
                     preferred_element_type=jnp.float32) + b1_ref[0, 0, c0:c0 + ff_chunk]
        h1 = jnp.maximum(h1, 0.0)
        ff = ff + jnp.dot(h1.astype(cd), w2_ref[0, c0:c0 + ff_chunk, :],
                          preferred_element_type=jnp.float32)
    ff = ff + b2_ref[0, 0]

    # ---- add & norm 2 ------------------------------------------------------ #
    out = _ln(y + ff, g2_ref[0, 0], be2_ref[0, 0])
    act_ref[...] = out                              # carry to next layer

    # Final encoder LayerNorm fused in; write the output block only at the last layer.
    @pl.when(layer == n_layers - 1)
    def _():
        o_ref[0] = _ln(out, gf_ref[0], bf_ref[0]).astype(o_ref.dtype)


# --------------------------------------------------------------------------- #
# Wrapper
# --------------------------------------------------------------------------- #
def transformer_enc2_forward(x, params, num_heads, src_key_padding_mask=None,
                             compute_dtype=jnp.bfloat16):
    """Equivalent of TransformerEnc2.forward (eval mode). x: (B, S, D) float32."""
    B, S, D = x.shape
    L = params["wqkv"].shape[0]
    F = params["w1"].shape[-1]
    ff_chunk = _pick_ff_chunk(F)

    if src_key_padding_mask is None:
        mask = jnp.zeros((B, 1, S), jnp.float32)
    else:
        mask = jnp.where(src_key_padding_mask, -1e9, 0.0).astype(jnp.float32).reshape(B, 1, S)

    cd = jnp.dtype(compute_dtype)
    # bf16 weights: half the weight DMA volume and MXU-native operands
    # (f32 accumulation via preferred_element_type inside the kernel).
    wqkv = params["wqkv"].astype(cd)
    wo = params["wo"].astype(cd)
    w1 = params["w1"].astype(cd)
    w2 = params["w2"].astype(cd)

    # Explicit VMEM budget: double-buffered per-layer weights + activations + headroom,
    # clamped to v7x's 64 MiB physical VMEM.
    per_layer_w = (3 * D * D + D * D + D * F + F * D) * cd.itemsize + (3 * D + F + 7 * D) * 4
    est = 2 * per_layer_w + 12 * S * D * 4 + 4 * S * ff_chunk * 4 + 8 * S * S * 4 + (2 << 20)
    vmem_limit = int(min(64 << 20, max(est, 8 << 20)))

    kernel = functools.partial(fused_encoder_kernel, num_heads=num_heads, ff_chunk=ff_chunk)

    grid_spec = pltpu.PrefetchScalarGridSpec(
        num_scalar_prefetch=0,
        grid=(B, L),                        # batch (parallel) outer, layer (sequential) inner
        in_specs=[
            pl.BlockSpec((1, S, D),    lambda b, l: (b, 0, 0)),      # x
            pl.BlockSpec((1, 1, S),    lambda b, l: (b, 0, 0)),      # additive key-pad mask
            pl.BlockSpec((1, 3, D, D), lambda b, l: (l, 0, 0, 0)),   # qkv proj W (bf16)
            pl.BlockSpec((1, 3, D),    lambda b, l: (l, 0, 0)),      # qkv proj b
            pl.BlockSpec((1, D, D),    lambda b, l: (l, 0, 0)),      # out proj W (bf16)
            pl.BlockSpec((1, 1, D),    lambda b, l: (l, 0, 0)),      # out proj b
            pl.BlockSpec((1, 1, D),    lambda b, l: (l, 0, 0)),      # ln1 gamma
            pl.BlockSpec((1, 1, D),    lambda b, l: (l, 0, 0)),      # ln1 beta
            pl.BlockSpec((1, D, F),    lambda b, l: (l, 0, 0)),      # ffn W1 (bf16)
            pl.BlockSpec((1, 1, F),    lambda b, l: (l, 0, 0)),      # ffn b1
            pl.BlockSpec((1, F, D),    lambda b, l: (l, 0, 0)),      # ffn W2 (bf16)
            pl.BlockSpec((1, 1, D),    lambda b, l: (l, 0, 0)),      # ffn b2
            pl.BlockSpec((1, 1, D),    lambda b, l: (l, 0, 0)),      # ln2 gamma
            pl.BlockSpec((1, 1, D),    lambda b, l: (l, 0, 0)),      # ln2 beta
            pl.BlockSpec((1, D),       lambda b, l: (0, 0)),         # final norm gamma
            pl.BlockSpec((1, D),       lambda b, l: (0, 0)),         # final norm beta
        ],
        out_specs=pl.BlockSpec((1, S, D), lambda b, l: (b, 0, 0)),
        scratch_shapes=[
            pltpu.VMEM((S, D), jnp.float32),   # resident activation (carried across layers)
            pltpu.VMEM((S, D), jnp.float32),   # concatenated attention heads
        ],
    )

    return pl.pallas_call(
        kernel,
        out_shape=jax.ShapeDtypeStruct((B, S, D), x.dtype),
        grid_spec=grid_spec,
        compiler_params=pltpu.CompilerParams(
            dimension_semantics=("parallel", "arbitrary"),
            vmem_limit_bytes=vmem_limit),
    )(x, mask, wqkv, params["bqkv"], wo, params["bo"],
      params["g1"], params["be1"], w1, params["b1"], w2, params["b2"],
      params["g2"], params["be2"], params["norm_g"], params["norm_b"])


# --------------------------------------------------------------------------- #
# Deterministic synthetic parameters (nn.TransformerEncoderLayer-shaped, stacked)
# --------------------------------------------------------------------------- #
def init_params(key, dim, ffn, layers):
    ks = jax.random.split(key, 6)

    def nrm(k, shape, scale):
        return jax.random.normal(k, shape, jnp.float32) * scale

    return {
        "wqkv": nrm(ks[0], (layers, 3, dim, dim), 1.0 / math.sqrt(dim)),
        "bqkv": nrm(ks[1], (layers, 3, dim), 0.01),
        "wo":   nrm(ks[2], (layers, dim, dim), 1.0 / math.sqrt(dim)),
        "bo":   jnp.zeros((layers, 1, dim), jnp.float32),
        "g1":   jnp.ones((layers, 1, dim), jnp.float32),
        "be1":  jnp.zeros((layers, 1, dim), jnp.float32),
        "w1":   nrm(ks[3], (layers, dim, ffn), 1.0 / math.sqrt(dim)),
        "b1":   nrm(ks[4], (layers, 1, ffn), 0.01),
        "w2":   nrm(ks[5], (layers, ffn, dim), 1.0 / math.sqrt(ffn)),
        "b2":   jnp.zeros((layers, 1, dim), jnp.float32),
        "g2":   jnp.ones((layers, 1, dim), jnp.float32),
        "be2":  jnp.zeros((layers, 1, dim), jnp.float32),
        "norm_g": jnp.ones((1, dim), jnp.float32),
        "norm_b": jnp.zeros((1, dim), jnp.float32),
    }


# --------------------------------------------------------------------------- #
# Pure-JAX reference (same math, same bf16 matmul boundaries), no mask.
# --------------------------------------------------------------------------- #
def reference_forward(x, params, num_heads, compute_dtype=jnp.bfloat16):
    B, S, D = x.shape
    H = num_heads
    Dh = D // H
    cd = jnp.dtype(compute_dtype)

    def mm(a, w):
        return jnp.dot(a.astype(cd), w.astype(cd), preferred_element_type=jnp.float32)

    def ln(z, g, b, eps=1e-5):
        mu = jnp.mean(z, axis=-1, keepdims=True)
        var = jnp.mean(jnp.square(z - mu), axis=-1, keepdims=True)
        return (z - mu) * lax.rsqrt(var + eps) * g + b

    L = params["wqkv"].shape[0]
    y = x.astype(jnp.float32)
    for l in range(L):
        q = (mm(y, params["wqkv"][l, 0]) + params["bqkv"][l, 0]) * (1.0 / math.sqrt(Dh))
        k = mm(y, params["wqkv"][l, 1]) + params["bqkv"][l, 1]
        v = mm(y, params["wqkv"][l, 2]) + params["bqkv"][l, 2]
        to_h = lambda t: t.reshape(B, S, H, Dh).transpose(0, 2, 1, 3)
        qh, kh, vh = to_h(q), to_h(k), to_h(v)
        s = jnp.einsum("bhqd,bhkd->bhqk", qh.astype(cd), kh.astype(cd),
                       preferred_element_type=jnp.float32)
        p = jax.nn.softmax(s, axis=-1)
        ctx = jnp.einsum("bhqk,bhkd->bhqd", p.astype(cd), vh.astype(cd),
                         preferred_element_type=jnp.float32)
        ctx = ctx.transpose(0, 2, 1, 3).reshape(B, S, D)
        attn = mm(ctx, params["wo"][l]) + params["bo"][l, 0]
        y1 = ln(y + attn, params["g1"][l, 0], params["be1"][l, 0])
        h1 = jnp.maximum(mm(y1, params["w1"][l]) + params["b1"][l, 0], 0.0)
        ff = mm(h1, params["w2"][l]) + params["b2"][l, 0]
        y = ln(y1 + ff, params["g2"][l, 0], params["be2"][l, 0])
    return ln(y, params["norm_g"][0], params["norm_b"][0])


# --------------------------------------------------------------------------- #
if __name__ == "__main__":
    B, S, DIM, HEADS, LAYERS, FFN = 2, 8, 64, 4, 2, 128

    key = jax.random.PRNGKey(0)
    kx, kp = jax.random.split(key)
    x = jax.random.normal(kx, (B, S, DIM), jnp.float32)
    params = init_params(kp, DIM, FFN, LAYERS)

    out = transformer_enc2_forward(x, params, HEADS, src_key_padding_mask=None)
    out = jax.block_until_ready(out)

    ref = reference_forward(x, params, HEADS)
    assert out.shape == (B, S, DIM)
    assert bool(jnp.all(jnp.isfinite(out)))
    max_err = float(jnp.max(jnp.abs(out - ref)))
    # bf16 matmul operands + approximate-reciprocal softmax => loosened tolerance
    # (outputs are O(1) after the final LayerNorm).
    assert max_err < 2e-2, f"mismatch vs reference: max abs err {max_err}"

    print("KERNEL_OK")
</pallas_src>

<mosaic_0001>
module attributes {stable_mosaic.version = 11 : i64} {
  func.func @fused_encoder_kernel(%arg0: i32, %arg1: i32, %arg2: memref<1x8x64xf32, #tpu.memory_space<vmem>>, %arg3: memref<1x1x8xf32, #tpu.memory_space<vmem>>, %arg4: memref<1x3x64x64xbf16, #tpu.memory_space<vmem>>, %arg5: memref<1x3x64xf32, #tpu.memory_space<vmem>>, %arg6: memref<1x64x64xbf16, #tpu.memory_space<vmem>>, %arg7: memref<1x1x64xf32, #tpu.memory_space<vmem>>, %arg8: memref<1x1x64xf32, #tpu.memory_space<vmem>>, %arg9: memref<1x1x64xf32, #tpu.memory_space<vmem>>, %arg10: memref<1x64x128xbf16, #tpu.memory_space<vmem>>, %arg11: memref<1x1x128xf32, #tpu.memory_space<vmem>>, %arg12: memref<1x128x64xbf16, #tpu.memory_space<vmem>>, %arg13: memref<1x1x64xf32, #tpu.memory_space<vmem>>, %arg14: memref<1x1x64xf32, #tpu.memory_space<vmem>>, %arg15: memref<1x1x64xf32, #tpu.memory_space<vmem>>, %arg16: memref<1x64xf32, #tpu.memory_space<vmem>>, %arg17: memref<1x64xf32, #tpu.memory_space<vmem>>, %arg18: memref<1x8x64xf32, #tpu.memory_space<vmem>>, %arg19: memref<8x64xf32, #tpu.memory_space<vmem>>, %arg20: memref<8x64xf32, #tpu.memory_space<vmem>>) attributes {dimension_semantics = [#tpu.dimension_semantics<parallel>, #tpu.dimension_semantics<arbitrary>], iteration_bounds = array<i64: 2, 2>, scalar_prefetch = 0 : i64, scratch_operands = 2 : i64, tpu.core_type = #tpu.core_type<tc>, window_params = [{transform_indices = @transform_0, window_bounds = array<i64: 1, 8, 64>}, {transform_indices = @transform_1, window_bounds = array<i64: 1, 1, 8>}, {transform_indices = @transform_2, window_bounds = array<i64: 1, 3, 64, 64>}, {transform_indices = @transform_3, window_bounds = array<i64: 1, 3, 64>}, {transform_indices = @transform_4, window_bounds = array<i64: 1, 64, 64>}, {transform_indices = @transform_5, window_bounds = array<i64: 1, 1, 64>}, {transform_indices = @transform_6, window_bounds = array<i64: 1, 1, 64>}, {transform_indices = @transform_7, window_bounds = array<i64: 1, 1, 64>}, {transform_indices = @transform_8, window_bounds = array<i64: 1, 64, 128>}, {transform_indices = @transform_9, window_bounds = array<i64: 1, 1, 128>}, {transform_indices = @transform_10, window_bounds = array<i64: 1, 128, 64>}, {transform_indices = @transform_11, window_bounds = array<i64: 1, 1, 64>}, {transform_indices = @transform_12, window_bounds = array<i64: 1, 1, 64>}, {transform_indices = @transform_13, window_bounds = array<i64: 1, 1, 64>}, {pipeline_mode = #tpu.pipeline_mode<synchronous>, transform_indices = @transform_14, window_bounds = array<i64: 1, 64>}, {pipeline_mode = #tpu.pipeline_mode<synchronous>, transform_indices = @transform_15, window_bounds = array<i64: 1, 64>}, {transform_indices = @transform_16, window_bounds = array<i64: 1, 8, 64>}]} {
    %c0_i32 = arith.constant 0 : i32
    %0 = arith.cmpi eq, %arg1, %c0_i32 : i32
    %1 = arith.extui %0 : i1 to i32
    %c0_i32_0 = arith.constant 0 : i32
    %2 = arith.cmpi ne, %1, %c0_i32_0 : i32
    scf.if %2 {
      %c0_98 = arith.constant 0 : index
      %c0_99 = arith.constant 0 : index
      %c0_100 = arith.constant 0 : index
      %204 = vector.load %arg2[%c0_98, %c0_99, %c0_100] : memref<1x8x64xf32, #tpu.memory_space<vmem>>, vector<1x8x64xf32>
      %205 = vector.shape_cast %204 : vector<1x8x64xf32> to vector<8x64xf32>
      %c0_101 = arith.constant 0 : index
      %c0_102 = arith.constant 0 : index
      %206 = vector.load %arg19[%c0_101, %c0_102] : memref<8x64xf32, #tpu.memory_space<vmem>>, vector<8x64xf32>
      tpu.vector_store %arg19[%c0_101, %c0_102], %205 {strides = array<i32>} : memref<8x64xf32, #tpu.memory_space<vmem>>, vector<8x64xf32>,
    } else {
    }
    %c0 = arith.constant 0 : index
    %c0_1 = arith.constant 0 : index
    %3 = vector.load %arg19[%c0, %c0_1] : memref<8x64xf32, #tpu.memory_space<vmem>>, vector<8x64xf32>
    %4 = arith.truncf %3 : vector<8x64xf32> to vector<8x64xbf16>
    %c0_2 = arith.constant 0 : index
    %c0_3 = arith.constant 0 : index
    %c0_4 = arith.constant 0 : index
    %c0_5 = arith.constant 0 : index
    %5 = vector.load %arg4[%c0_2, %c0_3, %c0_4, %c0_5] : memref<1x3x64x64xbf16, #tpu.memory_space<vmem>>, vector<1x1x64x64xbf16>
    %6 = vector.shape_cast %5 : vector<1x1x64x64xbf16> to vector<64x64xbf16>
    %cst = arith.constant dense<0.000000e+00> : vector<8x64xf32>
    %7 = tpu.matmul %4, %6, %cst {dimension_numbers = #tpu.dot_dimension_numbers<[1], [0], [0], [1], [0, 0, 1, 1], [], []>} : vector<8x64xbf16>, vector<64x64xbf16>, vector<8x64xf32> -> vector<8x64xf32>
    %c0_6 = arith.constant 0 : index
    %c0_7 = arith.constant 0 : index
    %c0_8 = arith.constant 0 : index
    %8 = vector.load %arg5[%c0_6, %c0_7, %c0_8] : memref<1x3x64xf32, #tpu.memory_space<vmem>>, vector<1x1x64xf32>
    %9 = vector.shape_cast %8 : vector<1x1x64xf32> to vector<64xf32>
    %10 = vector.shape_cast %9 : vector<64xf32> to vector<1x64xf32>
    %11 = vector.broadcast %10 : vector<1x64xf32> to vector<8x64xf32>
    %12 = arith.addf %7, %11 : vector<8x64xf32>
    %c0_9 = arith.constant 0 : index
    %c1 = arith.constant 1 : index
    %c0_10 = arith.constant 0 : index
    %c0_11 = arith.constant 0 : index
    %13 = vector.load %arg4[%c0_9, %c1, %c0_10, %c0_11] : memref<1x3x64x64xbf16, #tpu.memory_space<vmem>>, vector<1x1x64x64xbf16>
    %14 = vector.shape_cast %13 : vector<1x1x64x64xbf16> to vector<64x64xbf16>
    %cst_12 = arith.constant dense<0.000000e+00> : vector<8x64xf32>
    %15 = tpu.matmul %4, %14, %cst_12 {dimension_numbers = #tpu.dot_dimension_numbers<[1], [0], [0], [1], [0, 0, 1, 1], [], []>} : vector<8x64xbf16>, vector<64x64xbf16>, vector<8x64xf32> -> vector<8x64xf32>
    %c0_13 = arith.constant 0 : index
    %c1_14 = arith.constant 1 : index
    %c0_15 = arith.constant 0 : index
    %16 = vector.load %arg5[%c0_13, %c1_14, %c0_15] : memref<1x3x64xf32, #tpu.memory_space<vmem>>, vector<1x1x64xf32>
    %17 = vector.shape_cast %16 : vector<1x1x64xf32> to vector<64xf32>
    %18 = vector.shape_cast %17 : vector<64xf32> to vector<1x64xf32>
    %19 = vector.broadcast %18 : vector<1x64xf32> to vector<8x64xf32>
    %20 = arith.addf %15, %19 : vector<8x64xf32>
    %c0_16 = arith.constant 0 : index
    %c2 = arith.constant 2 : index
    %c0_17 = arith.constant 0 : index
    %c0_18 = arith.constant 0 : index
    %21 = vector.load %arg4[%c0_16, %c2, %c0_17, %c0_18] : memref<1x3x64x64xbf16, #tpu.memory_space<vmem>>, vector<1x1x64x64xbf16>
    %22 = vector.shape_cast %21 : vector<1x1x64x64xbf16> to vector<64x64xbf16>
    %cst_19 = arith.constant dense<0.000000e+00> : vector<8x64xf32>
    %23 = tpu.matmul %4, %22, %cst_19 {dimension_numbers = #tpu.dot_dimension_numbers<[1], [0], [0], [1], [0, 0, 1, 1], [], []>} : vector<8x64xbf16>, vector<64x64xbf16>, vector<8x64xf32> -> vector<8x64xf32>
    %c0_20 = arith.constant 0 : index
    %c2_21 = arith.constant 2 : index
    %c0_22 = arith.constant 0 : index
    %24 = vector.load %arg5[%c0_20, %c2_21, %c0_22] : memref<1x3x64xf32, #tpu.memory_space<vmem>>, vector<1x1x64xf32>
    %25 = vector.shape_cast %24 : vector<1x1x64xf32> to vector<64xf32>
    %26 = vector.shape_cast %25 : vector<64xf32> to vector<1x64xf32>
    %27 = vector.broadcast %26 : vector<1x64xf32> to vector<8x64xf32>
    %28 = arith.addf %23, %27 : vector<8x64xf32>
    %cst_23 = arith.constant 2.500000e-01 : f32
    %29 = vector.broadcast %cst_23 : f32 to vector<8x64xf32>
    %30 = arith.mulf %12, %29 : vector<8x64xf32>
    %31 = arith.truncf %30 : vector<8x64xf32> to vector<8x64xbf16>
    %32 = arith.truncf %20 : vector<8x64xf32> to vector<8x64xbf16>
    %33 = arith.truncf %28 : vector<8x64xf32> to vector<8x64xbf16>
    %c0_24 = arith.constant 0 : index
    %c0_25 = arith.constant 0 : index
    %c0_26 = arith.constant 0 : index
    %34 = vector.load %arg3[%c0_24, %c0_25, %c0_26] : memref<1x1x8xf32, #tpu.memory_space<vmem>>, vector<1x1x8xf32>
    %35 = vector.shape_cast %34 : vector<1x1x8xf32> to vector<1x8xf32>
    %36 = vector.shape_cast %35 : vector<1x8xf32> to vector<1x8xf32>
    %37 = vector.broadcast %36 : vector<1x8xf32> to vector<8x8xf32>
    %38 = vector.extract_strided_slice %31 {offsets = [0, 0], sizes = [8, 16], strides = [1, 1]} : vector<8x64xbf16> to vector<8x16xbf16>
    %39 = vector.extract_strided_slice %32 {offsets = [0, 0], sizes = [8, 16], strides = [1, 1]} : vector<8x64xbf16> to vector<8x16xbf16>
    %40 = vector.extract_strided_slice %33 {offsets = [0, 0], sizes = [8, 16], strides = [1, 1]} : vector<8x64xbf16> to vector<8x16xbf16>
    %cst_27 = arith.constant dense<0.000000e+00> : vector<8x8xf32>
    %41 = tpu.matmul %38, %39, %cst_27 {dimension_numbers = #tpu.dot_dimension_numbers<[1], [1], [0], [0], [0, 0, 1, 0], [], []>} : vector<8x16xbf16>, vector<8x16xbf16>, vector<8x8xf32> -> vector<8x8xf32>
    %42 = arith.addf %41, %37 : vector<8x8xf32>
    %cst_28 = arith.constant dense<0xFF800000> : vector<8xf32>
    %43 = vector.multi_reduction <maximumf>, %42, %cst_28 [1] : vector<8x8xf32> to vector<8xf32>
    %44 = vector.shape_cast %43 : vector<8xf32> to vector<8x1xf32>
    %45 = vector.broadcast %44 : vector<8x1xf32> to vector<8x8xf32>
    %46 = arith.subf %42, %45 : vector<8x8xf32>
    %47 = math.exp %46 : vector<8x8xf32>
    %cst_29 = arith.constant dense<0.000000e+00> : vector<8xf32>
    %48 = vector.multi_reduction <add>, %47, %cst_29 [1] : vector<8x8xf32> to vector<8xf32>
    %49 = vector.shape_cast %48 : vector<8xf32> to vector<8x1xf32>
    %50 = tpu.reciprocal %49 {approx = true} : vector<8x1xf32> -> vector<8x1xf32>
    %51 = vector.broadcast %50 : vector<8x1xf32> to vector<8x8xf32>
    %52 = arith.mulf %47, %51 : vector<8x8xf32>
    %53 = arith.truncf %52 : vector<8x8xf32> to vector<8x8xbf16>
    %cst_30 = arith.constant dense<0.000000e+00> : vector<8x16xf32>
    %54 = tpu.matmul %53, %40, %cst_30 {dimension_numbers = #tpu.dot_dimension_numbers<[1], [0], [0], [1], [0, 0, 1, 1], [], []>} : vector<8x8xbf16>, vector<8x16xbf16>, vector<8x16xf32> -> vector<8x16xf32>
    %c0_31 = arith.constant 0 : index
    %c0_32 = arith.constant 0 : index
    %55 = vector.load %arg20[%c0_31, %c0_32] : memref<8x64xf32, #tpu.memory_space<vmem>>, vector<8x16xf32>
    tpu.vector_store %arg20[%c0_31, %c0_32], %54 {strides = array<i32>} : memref<8x64xf32, #tpu.memory_space<vmem>>, vector<8x16xf32>,
    %56 = vector.extract_strided_slice %31 {offsets = [0, 16], sizes = [8, 16], strides = [1, 1]} : vector<8x64xbf16> to vector<8x16xbf16>
    %57 = vector.extract_strided_slice %32 {offsets = [0, 16], sizes = [8, 16], strides = [1, 1]} : vector<8x64xbf16> to vector<8x16xbf16>
    %58 = vector.extract_strided_slice %33 {offsets = [0, 16], sizes = [8, 16], strides = [1, 1]} : vector<8x64xbf16> to vector<8x16xbf16>
    %cst_33 = arith.constant dense<0.000000e+00> : vector<8x8xf32>
    %59 = tpu.matmul %56, %57, %cst_33 {dimension_numbers = #tpu.dot_dimension_numbers<[1], [1], [0], [0], [0, 0, 1, 0], [], []>} : vector<8x16xbf16>, vector<8x16xbf16>, vector<8x8xf32> -> vector<8x8xf32>
    %60 = arith.addf %59, %37 : vector<8x8xf32>
    %cst_34 = arith.constant dense<0xFF800000> : vector<8xf32>
    %61 = vector.multi_reduction <maximumf>, %60, %cst_34 [1] : vector<8x8xf32> to vector<8xf32>
    %62 = vector.shape_cast %61 : vector<8xf32> to vector<8x1xf32>
    %63 = vector.broadcast %62 : vector<8x1xf32> to vector<8x8xf32>
    %64 = arith.subf %60, %63 : vector<8x8xf32>
    %65 = math.exp %64 : vector<8x8xf32>
    %cst_35 = arith.constant dense<0.000000e+00> : vector<8xf32>
    %66 = vector.multi_reduction <add>, %65, %cst_35 [1] : vector<8x8xf32> to vector<8xf32>
    %67 = vector.shape_cast %66 : vector<8xf32> to vector<8x1xf32>
    %68 = tpu.reciprocal %67 {approx = true} : vector<8x1xf32> -> vector<8x1xf32>
    %69 = vector.broadcast %68 : vector<8x1xf32> to vector<8x8xf32>
    %70 = arith.mulf %65, %69 : vector<8x8xf32>
    %71 = arith.truncf %70 : vector<8x8xf32> to vector<8x8xbf16>
    %cst_36 = arith.constant dense<0.000000e+00> : vector<8x16xf32>
    %72 = tpu.matmul %71, %58, %cst_36 {dimension_numbers = #tpu.dot_dimension_numbers<[1], [0], [0], [1], [0, 0, 1, 1], [], []>} : vector<8x8xbf16>, vector<8x16xbf16>, vector<8x16xf32> -> vector<8x16xf32>
    %c0_37 = arith.constant 0 : index
    %c16 = arith.constant 16 : index
    %73 = vector.load %arg20[%c0_37, %c16] : memref<8x64xf32, #tpu.memory_space<vmem>>, vector<8x16xf32>
    tpu.vector_store %arg20[%c0_37, %c16], %72 {strides = array<i32>} : memref<8x64xf32, #tpu.memory_space<vmem>>, vector<8x16xf32>,
    %74 = vector.extract_strided_slice %31 {offsets = [0, 32], sizes = [8, 16], strides = [1, 1]} : vector<8x64xbf16> to vector<8x16xbf16>
    %75 = vector.extract_strided_slice %32 {offsets = [0, 32], sizes = [8, 16], strides = [1, 1]} : vector<8x64xbf16> to vector<8x16xbf16>
    %76 = vector.extract_strided_slice %33 {offsets = [0, 32], sizes = [8, 16], strides = [1, 1]} : vector<8x64xbf16> to vector<8x16xbf16>
    %cst_38 = arith.constant dense<0.000000e+00> : vector<8x8xf32>
    %77 = tpu.matmul %74, %75, %cst_38 {dimension_numbers = #tpu.dot_dimension_numbers<[1], [1], [0], [0], [0, 0, 1, 0], [], []>} : vector<8x16xbf16>, vector<8x16xbf16>, vector<8x8xf32> -> vector<8x8xf32>
    %78 = arith.addf %77, %37 : vector<8x8xf32>
    %cst_39 = arith.constant dense<0xFF800000> : vector<8xf32>
    %79 = vector.multi_reduction <maximumf>, %78, %cst_39 [1] : vector<8x8xf32> to vector<8xf32>
    %80 = vector.shape_cast %79 : vector<8xf32> to vector<8x1xf32>
    %81 = vector.broadcast %80 : vector<8x1xf32> to vector<8x8xf32>
    %82 = arith.subf %78, %81 : vector<8x8xf32>
    %83 = math.exp %82 : vector<8x8xf32>
    %cst_40 = arith.constant dense<0.000000e+00> : vector<8xf32>
    %84 = vector.multi_reduction <add>, %83, %cst_40 [1] : vector<8x8xf32> to vector<8xf32>
    %85 = vector.shape_cast %84 : vector<8xf32> to vector<8x1xf32>
    %86 = tpu.reciprocal %85 {approx = true} : vector<8x1xf32> -> vector<8x1xf32>
    %87 = vector.broadcast %86 : vector<8x1xf32> to vector<8x8xf32>
    %88 = arith.mulf %83, %87 : vector<8x8xf32>
    %89 = arith.truncf %88 : vector<8x8xf32> to vector<8x8xbf16>
    %cst_41 = arith.constant dense<0.000000e+00> : vector<8x16xf32>
    %90 = tpu.matmul %89, %76, %cst_41 {dimension_numbers = #tpu.dot_dimension_numbers<[1], [0], [0], [1], [0, 0, 1, 1], [], []>} : vector<8x8xbf16>, vector<8x16xbf16>, vector<8x16xf32> -> vector<8x16xf32>
    %c0_42 = arith.constant 0 : index
    %c32 = arith.constant 32 : index
    %91 = vector.load %arg20[%c0_42, %c32] : memref<8x64xf32, #tpu.memory_space<vmem>>, vector<8x16xf32>
    tpu.vector_store %arg20[%c0_42, %c32], %90 {strides = array<i32>} : memref<8x64xf32, #tpu.memory_space<vmem>>, vector<8x16xf32>,
    %92 = vector.extract_strided_slice %31 {offsets = [0, 48], sizes = [8, 16], strides = [1, 1]} : vector<8x64xbf16> to vector<8x16xbf16>
    %93 = vector.extract_strided_slice %32 {offsets = [0, 48], sizes = [8, 16], strides = [1, 1]} : vector<8x64xbf16> to vector<8x16xbf16>
    %94 = vector.extract_strided_slice %33 {offsets = [0, 48], sizes = [8, 16], strides = [1, 1]} : vector<8x64xbf16> to vector<8x16xbf16>
    %cst_43 = arith.constant dense<0.000000e+00> : vector<8x8xf32>
    %95 = tpu.matmul %92, %93, %cst_43 {dimension_numbers = #tpu.dot_dimension_numbers<[1], [1], [0], [0], [0, 0, 1, 0], [], []>} : vector<8x16xbf16>, vector<8x16xbf16>, vector<8x8xf32> -> vector<8x8xf32>
    %96 = arith.addf %95, %37 : vector<8x8xf32>
    %cst_44 = arith.constant dense<0xFF800000> : vector<8xf32>
    %97 = vector.multi_reduction <maximumf>, %96, %cst_44 [1] : vector<8x8xf32> to vector<8xf32>
    %98 = vector.shape_cast %97 : vector<8xf32> to vector<8x1xf32>
    %99 = vector.broadcast %98 : vector<8x1xf32> to vector<8x8xf32>
    %100 = arith.subf %96, %99 : vector<8x8xf32>
    %101 = math.exp %100 : vector<8x8xf32>
    %cst_45 = arith.constant dense<0.000000e+00> : vector<8xf32>
    %102 = vector.multi_reduction <add>, %101, %cst_45 [1] : vector<8x8xf32> to vector<8xf32>
    %103 = vector.shape_cast %102 : vector<8xf32> to vector<8x1xf32>
    %104 = tpu.reciprocal %103 {approx = true} : vector<8x1xf32> -> vector<8x1xf32>
    %105 = vector.broadcast %104 : vector<8x1xf32> to vector<8x8xf32>
    %106 = arith.mulf %101, %105 : vector<8x8xf32>
    %107 = arith.truncf %106 : vector<8x8xf32> to vector<8x8xbf16>
    %cst_46 = arith.constant dense<0.000000e+00> : vector<8x16xf32>
    %108 = tpu.matmul %107, %94, %cst_46 {dimension_numbers = #tpu.dot_dimension_numbers<[1], [0], [0], [1], [0, 0, 1, 1], [], []>} : vector<8x8xbf16>, vector<8x16xbf16>, vector<8x16xf32> -> vector<8x16xf32>
    %c0_47 = arith.constant 0 : index
    %c48 = arith.constant 48 : index
    %109 = vector.load %arg20[%c0_47, %c48] : memref<8x64xf32, #tpu.memory_space<vmem>>, vector<8x16xf32>
    tpu.vector_store %arg20[%c0_47, %c48], %108 {strides = array<i32>} : memref<8x64xf32, #tpu.memory_space<vmem>>, vector<8x16xf32>,
    %c0_48 = arith.constant 0 : index
    %c0_49 = arith.constant 0 : index
    %110 = vector.load %arg20[%c0_48, %c0_49] : memref<8x64xf32, #tpu.memory_space<vmem>>, vector<8x64xf32>
    %111 = arith.truncf %110 : vector<8x64xf32> to vector<8x64xbf16>
    %c0_50 = arith.constant 0 : index
    %c0_51 = arith.constant 0 : index
    %c0_52 = arith.constant 0 : index
    %112 = vector.load %arg6[%c0_50, %c0_51, %c0_52] : memref<1x64x64xbf16, #tpu.memory_space<vmem>>, vector<1x64x64xbf16>
    %113 = vector.shape_cast %112 : vector<1x64x64xbf16> to vector<64x64xbf16>
    %cst_53 = arith.constant dense<0.000000e+00> : vector<8x64xf32>
    %114 = tpu.matmul %111, %113, %cst_53 {dimension_numbers = #tpu.dot_dimension_numbers<[1], [0], [0], [1], [0, 0, 1, 1], [], []>} : vector<8x64xbf16>, vector<64x64xbf16>, vector<8x64xf32> -> vector<8x64xf32>
    %c0_54 = arith.constant 0 : index
    %c0_55 = arith.constant 0 : index
    %c0_56 = arith.constant 0 : index
    %115 = vector.load %arg7[%c0_54, %c0_55, %c0_56] : memref<1x1x64xf32, #tpu.memory_space<vmem>>, vector<1x1x64xf32>
    %116 = vector.shape_cast %115 : vector<1x1x64xf32> to vector<64xf32>
    %117 = vector.shape_cast %116 : vector<64xf32> to vector<1x64xf32>
    %118 = vector.broadcast %117 : vector<1x64xf32> to vector<8x64xf32>
    %119 = arith.addf %114, %118 : vector<8x64xf32>
    %120 = arith.addf %3, %119 : vector<8x64xf32>
    %c0_57 = arith.constant 0 : index
    %c0_58 = arith.constant 0 : index
    %c0_59 = arith.constant 0 : index
    %121 = vector.load %arg8[%c0_57, %c0_58, %c0_59] : memref<1x1x64xf32, #tpu.memory_space<vmem>>, vector<1x1x64xf32>
    %122 = vector.shape_cast %121 : vector<1x1x64xf32> to vector<64xf32>
    %c0_60 = arith.constant 0 : index
    %c0_61 = arith.constant 0 : index
    %c0_62 = arith.constant 0 : index
    %123 = vector.load %arg9[%c0_60, %c0_61, %c0_62] : memref<1x1x64xf32, #tpu.memory_space<vmem>>, vector<1x1x64xf32>
    %124 = vector.shape_cast %123 : vector<1x1x64xf32> to vector<64xf32>
    %cst_63 = arith.constant dense<0.000000e+00> : vector<8xf32>
    %125 = vector.multi_reduction <add>, %120, %cst_63 [1] : vector<8x64xf32> to vector<8xf32>
    %126 = vector.shape_cast %125 : vector<8xf32> to vector<8x1xf32>
    %cst_64 = arith.constant 6.400000e+01 : f32
    %127 = vector.broadcast %cst_64 : f32 to vector<8x1xf32>
    %128 = arith.divf %126, %127 : vector<8x1xf32>
    %129 = vector.broadcast %128 : vector<8x1xf32> to vector<8x64xf32>
    %130 = arith.subf %120, %129 : vector<8x64xf32>
    %131 = arith.mulf %130, %130 : vector<8x64xf32>
    %cst_65 = arith.constant dense<0.000000e+00> : vector<8xf32>
    %132 = vector.multi_reduction <add>, %131, %cst_65 [1] : vector<8x64xf32> to vector<8xf32>
    %133 = vector.shape_cast %132 : vector<8xf32> to vector<8x1xf32>
    %cst_66 = arith.constant 6.400000e+01 : f32
    %134 = vector.broadcast %cst_66 : f32 to vector<8x1xf32>
    %135 = arith.divf %133, %134 : vector<8x1xf32>
    %136 = vector.broadcast %128 : vector<8x1xf32> to vector<8x64xf32>
    %137 = arith.subf %120, %136 : vector<8x64xf32>
    %cst_67 = arith.constant 9.99999974E-6 : f32
    %138 = vector.broadcast %cst_67 : f32 to vector<8x1xf32>
    %139 = arith.addf %135, %138 : vector<8x1xf32>
    %140 = math.rsqrt %139 : vector<8x1xf32>
    %141 = vector.broadcast %140 : vector<8x1xf32> to vector<8x64xf32>
    %142 = arith.mulf %137, %141 : vector<8x64xf32>
    %143 = vector.shape_cast %122 : vector<64xf32> to vector<1x64xf32>
    %144 = vector.broadcast %143 : vector<1x64xf32> to vector<8x64xf32>
    %145 = arith.mulf %142, %144 : vector<8x64xf32>
    %146 = vector.shape_cast %124 : vector<64xf32> to vector<1x64xf32>
    %147 = vector.broadcast %146 : vector<1x64xf32> to vector<8x64xf32>
    %148 = arith.addf %145, %147 : vector<8x64xf32>
    %149 = arith.truncf %148 : vector<8x64xf32> to vector<8x64xbf16>
    %cst_68 = arith.constant 0.000000e+00 : f32
    %150 = vector.broadcast %cst_68 : f32 to vector<8x64xf32>
    %c0_69 = arith.constant 0 : index
    %c0_70 = arith.constant 0 : index
    %c0_71 = arith.constant 0 : index
    %151 = vector.load %arg10[%c0_69, %c0_70, %c0_71] : memref<1x64x128xbf16, #tpu.memory_space<vmem>>, vector<1x64x128xbf16>
    %152 = vector.shape_cast %151 : vector<1x64x128xbf16> to vector<64x128xbf16>
    %cst_72 = arith.constant dense<0.000000e+00> : vector<8x128xf32>
    %153 = tpu.matmul %149, %152, %cst_72 {dimension_numbers = #tpu.dot_dimension_numbers<[1], [0], [0], [1], [0, 0, 1, 1], [], []>} : vector<8x64xbf16>, vector<64x128xbf16>, vector<8x128xf32> -> vector<8x128xf32>
    %c0_73 = arith.constant 0 : index
    %c0_74 = arith.constant 0 : index
    %c0_75 = arith.constant 0 : index
    %154 = vector.load %arg11[%c0_73, %c0_74, %c0_75] : memref<1x1x128xf32, #tpu.memory_space<vmem>>, vector<1x1x128xf32>
    %155 = vector.shape_cast %154 : vector<1x1x128xf32> to vector<128xf32>
    %156 = vector.shape_cast %155 : vector<128xf32> to vector<1x128xf32>
    %157 = vector.broadcast %156 : vector<1x128xf32> to vector<8x128xf32>
    %158 = arith.addf %153, %157 : vector<8x128xf32>
    %cst_76 = arith.constant 0.000000e+00 : f32
    %159 = vector.broadcast %cst_76 : f32 to vector<8x128xf32>
    %160 = arith.maximumf %158, %159 : vector<8x128xf32>
    %161 = arith.truncf %160 : vector<8x128xf32> to vector<8x128xbf16>
    %c0_77 = arith.constant 0 : index
    %c0_78 = arith.constant 0 : index
    %c0_79 = arith.constant 0 : index
    %162 = vector.load %arg12[%c0_77, %c0_78, %c0_79] : memref<1x128x64xbf16, #tpu.memory_space<vmem>>, vector<1x128x64xbf16>
    %163 = vector.shape_cast %162 : vector<1x128x64xbf16> to vector<128x64xbf16>
    %cst_80 = arith.constant dense<0.000000e+00> : vector<8x64xf32>
    %164 = tpu.matmul %161, %163, %cst_80 {dimension_numbers = #tpu.dot_dimension_numbers<[1], [0], [0], [1], [0, 0, 1, 1], [], []>} : vector<8x128xbf16>, vector<128x64xbf16>, vector<8x64xf32> -> vector<8x64xf32>
    %165 = arith.addf %150, %164 : vector<8x64xf32>
    %c0_81 = arith.constant 0 : index
    %c0_82 = arith.constant 0 : index
    %c0_83 = arith.constant 0 : index
    %166 = vector.load %arg13[%c0_81, %c0_82, %c0_83] : memref<1x1x64xf32, #tpu.memory_space<vmem>>, vector<1x1x64xf32>
    %167 = vector.shape_cast %166 : vector<1x1x64xf32> to vector<64xf32>
    %168 = vector.shape_cast %167 : vector<64xf32> to vector<1x64xf32>
    %169 = vector.broadcast %168 : vector<1x64xf32> to vector<8x64xf32>
    %170 = arith.addf %165, %169 : vector<8x64xf32>
    %171 = arith.addf %148, %170 : vector<8x64xf32>
    %c0_84 = arith.constant 0 : index
    %c0_85 = arith.constant 0 : index
    %c0_86 = arith.constant 0 : index
    %172 = vector.load %arg14[%c0_84, %c0_85, %c0_86] : memref<1x1x64xf32, #tpu.memory_space<vmem>>, vector<1x1x64xf32>
    %173 = vector.shape_cast %172 : vector<1x1x64xf32> to vector<64xf32>
    %c0_87 = arith.constant 0 : index
    %c0_88 = arith.constant 0 : index
    %c0_89 = arith.constant 0 : index
    %174 = vector.load %arg15[%c0_87, %c0_88, %c0_89] : memref<1x1x64xf32, #tpu.memory_space<vmem>>, vector<1x1x64xf32>
    %175 = vector.shape_cast %174 : vector<1x1x64xf32> to vector<64xf32>
    %cst_90 = arith.constant dense<0.000000e+00> : vector<8xf32>
    %176 = vector.multi_reduction <add>, %171, %cst_90 [1] : vector<8x64xf32> to vector<8xf32>
    %177 = vector.shape_cast %176 : vector<8xf32> to vector<8x1xf32>
    %cst_91 = arith.constant 6.400000e+01 : f32
    %178 = vector.broadcast %cst_91 : f32 to vector<8x1xf32>
    %179 = arith.divf %177, %178 : vector<8x1xf32>
    %180 = vector.broadcast %179 : vector<8x1xf32> to vector<8x64xf32>
    %181 = arith.subf %171, %180 : vector<8x64xf32>
    %182 = arith.mulf %181, %181 : vector<8x64xf32>
    %cst_92 = arith.constant dense<0.000000e+00> : vector<8xf32>
    %183 = vector.multi_reduction <add>, %182, %cst_92 [1] : vector<8x64xf32> to vector<8xf32>
    %184 = vector.shape_cast %183 : vector<8xf32> to vector<8x1xf32>
    %cst_93 = arith.constant 6.400000e+01 : f32
    %185 = vector.broadcast %cst_93 : f32 to vector<8x1xf32>
    %186 = arith.divf %184, %185 : vector<8x1xf32>
    %187 = vector.broadcast %179 : vector<8x1xf32> to vector<8x64xf32>
    %188 = arith.subf %171, %187 : vector<8x64xf32>
    %cst_94 = arith.constant 9.99999974E-6 : f32
    %189 = vector.broadcast %cst_94 : f32 to vector<8x1xf32>
    %190 = arith.addf %186, %189 : vector<8x1xf32>
    %191 = math.rsqrt %190 : vector<8x1xf32>
    %192 = vector.broadcast %191 : vector<8x1xf32> to vector<8x64xf32>
    %193 = arith.mulf %188, %192 : vector<8x64xf32>
    %194 = vector.shape_cast %173 : vector<64xf32> to vector<1x64xf32>
    %195 = vector.broadcast %194 : vector<1x64xf32> to vector<8x64xf32>
    %196 = arith.mulf %193, %195 : vector<8x64xf32>
    %197 = vector.shape_cast %175 : vector<64xf32> to vector<1x64xf32>
    %198 = vector.broadcast %197 : vector<1x64xf32> to vector<8x64xf32>
    %199 = arith.addf %196, %198 : vector<8x64xf32>
    %c0_95 = arith.constant 0 : index
    %c0_96 = arith.constant 0 : index
    %200 = vector.load %arg19[%c0_95, %c0_96] : memref<8x64xf32, #tpu.memory_space<vmem>>, vector<8x64xf32>
    tpu.vector_store %arg19[%c0_95, %c0_96], %199 {strides = array<i32>} : memref<8x64xf32, #tpu.memory_space<vmem>>, vector<8x64xf32>,
    %c1_i32 = arith.constant 1 : i32
    %201 = arith.cmpi eq, %arg1, %c1_i32 : i32
    %202 = arith.extui %201 : i1 to i32
    %c0_i32_97 = arith.constant 0 : i32
    %203 = arith.cmpi ne, %202, %c0_i32_97 : i32
    scf.if %203 {
      %c0_98 = arith.constant 0 : index
      %c0_99 = arith.constant 0 : index
      %204 = vector.load %arg16[%c0_98, %c0_99] : memref<1x64xf32, #tpu.memory_space<vmem>>, vector<1x64xf32>
      %205 = vector.shape_cast %204 : vector<1x64xf32> to vector<64xf32>
      %c0_100 = arith.constant 0 : index
      %c0_101 = arith.constant 0 : index
      %206 = vector.load %arg17[%c0_100, %c0_101] : memref<1x64xf32, #tpu.memory_space<vmem>>, vector<1x64xf32>
      %207 = vector.shape_cast %206 : vector<1x64xf32> to vector<64xf32>
      %cst_102 = arith.constant dense<0.000000e+00> : vector<8xf32>
      %208 = vector.multi_reduction <add>, %199, %cst_102 [1] : vector<8x64xf32> to vector<8xf32>
      %209 = vector.shape_cast %208 : vector<8xf32> to vector<8x1xf32>
      %cst_103 = arith.constant 6.400000e+01 : f32
      %210 = vector.broadcast %cst_103 : f32 to vector<8x1xf32>
      %211 = arith.divf %209, %210 : vector<8x1xf32>
      %212 = vector.broadcast %211 : vector<8x1xf32> to vector<8x64xf32>
      %213 = arith.subf %199, %212 : vector<8x64xf32>
      %214 = arith.mulf %213, %213 : vector<8x64xf32>
      %cst_104 = arith.constant dense<0.000000e+00> : vector<8xf32>
      %215 = vector.multi_reduction <add>, %214, %cst_104 [1] : vector<8x64xf32> to vector<8xf32>
      %216 = vector.shape_cast %215 : vector<8xf32> to vector<8x1xf32>
      %cst_105 = arith.constant 6.400000e+01 : f32
      %217 = vector.broadcast %cst_105 : f32 to vector<8x1xf32>
      %218 = arith.divf %216, %217 : vector<8x1xf32>
      %219 = vector.broadcast %211 : vector<8x1xf32> to vector<8x64xf32>
      %220 = arith.subf %199, %219 : vector<8x64xf32>
      %cst_106 = arith.constant 9.99999974E-6 : f32
      %221 = vector.broadcast %cst_106 : f32 to vector<8x1xf32>
      %222 = arith.addf %218, %221 : vector<8x1xf32>
      %223 = math.rsqrt %222 : vector<8x1xf32>
      %224 = vector.broadcast %223 : vector<8x1xf32> to vector<8x64xf32>
      %225 = arith.mulf %220, %224 : vector<8x64xf32>
      %226 = vector.shape_cast %205 : vector<64xf32> to vector<1x64xf32>
      %227 = vector.broadcast %226 : vector<1x64xf32> to vector<8x64xf32>
      %228 = arith.mulf %225, %227 : vector<8x64xf32>
      %229 = vector.shape_cast %207 : vector<64xf32> to vector<1x64xf32>
      %230 = vector.broadcast %229 : vector<1x64xf32> to vector<8x64xf32>
      %231 = arith.addf %228, %230 : vector<8x64xf32>
      %c0_107 = arith.constant 0 : index
      %c0_108 = arith.constant 0 : index
      %c0_109 = arith.constant 0 : index
      %232 = vector.load %arg18[%c0_107, %c0_108, %c0_109] : memref<1x8x64xf32, #tpu.memory_space<vmem>>, vector<1x8x64xf32>
      %233 = vector.shape_cast %232 : vector<1x8x64xf32> to vector<8x64xf32>
      %234 = vector.shape_cast %231 : vector<8x64xf32> to vector<1x8x64xf32>
      tpu.vector_store %arg18[%c0_107, %c0_108, %c0_109], %234 {strides = array<i32>} : memref<1x8x64xf32, #tpu.memory_space<vmem>>, vector<1x8x64xf32>,
    } else {
    }
    return
  }
  func.func @transform_0(%arg0: i32, %arg1: i32) -> (i32, i32, i32) {
    %c0_i32 = arith.constant 0 : i32
    %c0_i32_0 = arith.constant 0 : i32
    %c0_i32_1 = arith.constant 0 : i32
    return %arg0, %c0_i32, %c0_i32_0 : i32, i32, i32
  }
  func.func @transform_1(%arg0: i32, %arg1: i32) -> (i32, i32, i32) {
    %c0_i32 = arith.constant 0 : i32
    %c0_i32_0 = arith.constant 0 : i32
    %c0_i32_1 = arith.constant 0 : i32
    return %arg0, %c0_i32, %c0_i32_0 : i32, i32, i32
  }
  func.func @transform_2(%arg0: i32, %arg1: i32) -> (i32, i32, i32, i32) {
    %c0_i32 = arith.constant 0 : i32
    %c0_i32_0 = arith.constant 0 : i32
    %c0_i32_1 = arith.constant 0 : i32
    %c0_i32_2 = arith.constant 0 : i32
    return %arg1, %c0_i32, %c0_i32_0, %c0_i32_1 : i32, i32, i32, i32
  }
  func.func @transform_3(%arg0: i32, %arg1: i32) -> (i32, i32, i32) {
    %c0_i32 = arith.constant 0 : i32
    %c0_i32_0 = arith.constant 0 : i32
    %c0_i32_1 = arith.constant 0 : i32
    return %arg1, %c0_i32, %c0_i32_0 : i32, i32, i32
  }
  func.func @transform_4(%arg0: i32, %arg1: i32) -> (i32, i32, i32) {
    %c0_i32 = arith.constant 0 : i32
    %c0_i32_0 = arith.constant 0 : i32
    %c0_i32_1 = arith.constant 0 : i32
    return %arg1, %c0_i32, %c0_i32_0 : i32, i32, i32
  }
  func.func @transform_5(%arg0: i32, %arg1: i32) -> (i32, i32, i32) {
    %c0_i32 = arith.constant 0 : i32
    %c0_i32_0 = arith.constant 0 : i32
    %c0_i32_1 = arith.constant 0 : i32
    return %arg1, %c0_i32, %c0_i32_0 : i32, i32, i32
  }
  func.func @transform_6(%arg0: i32, %arg1: i32) -> (i32, i32, i32) {
    %c0_i32 = arith.constant 0 : i32
    %c0_i32_0 = arith.constant 0 : i32
    %c0_i32_1 = arith.constant 0 : i32
    return %arg1, %c0_i32, %c0_i32_0 : i32, i32, i32
  }
  func.func @transform_7(%arg0: i32, %arg1: i32) -> (i32, i32, i32) {
    %c0_i32 = arith.constant 0 : i32
    %c0_i32_0 = arith.constant 0 : i32
    %c0_i32_1 = arith.constant 0 : i32
    return %arg1, %c0_i32, %c0_i32_0 : i32, i32, i32
  }
  func.func @transform_8(%arg0: i32, %arg1: i32) -> (i32, i32, i32) {
    %c0_i32 = arith.constant 0 : i32
    %c0_i32_0 = arith.constant 0 : i32
    %c0_i32_1 = arith.constant 0 : i32
    return %arg1, %c0_i32, %c0_i32_0 : i32, i32, i32
  }
  func.func @transform_9(%arg0: i32, %arg1: i32) -> (i32, i32, i32) {
    %c0_i32 = arith.constant 0 : i32
    %c0_i32_0 = arith.constant 0 : i32
    %c0_i32_1 = arith.constant 0 : i32
    return %arg1, %c0_i32, %c0_i32_0 : i32, i32, i32
  }
  func.func @transform_10(%arg0: i32, %arg1: i32) -> (i32, i32, i32) {
    %c0_i32 = arith.constant 0 : i32
    %c0_i32_0 = arith.constant 0 : i32
    %c0_i32_1 = arith.constant 0 : i32
    return %arg1, %c0_i32, %c0_i32_0 : i32, i32, i32
  }
  func.func @transform_11(%arg0: i32, %arg1: i32) -> (i32, i32, i32) {
    %c0_i32 = arith.constant 0 : i32
    %c0_i32_0 = arith.constant 0 : i32
    %c0_i32_1 = arith.constant 0 : i32
    return %arg1, %c0_i32, %c0_i32_0 : i32, i32, i32
  }
  func.func @transform_12(%arg0: i32, %arg1: i32) -> (i32, i32, i32) {
    %c0_i32 = arith.constant 0 : i32
    %c0_i32_0 = arith.constant 0 : i32
    %c0_i32_1 = arith.constant 0 : i32
    return %arg1, %c0_i32, %c0_i32_0 : i32, i32, i32
  }
  func.func @transform_13(%arg0: i32, %arg1: i32) -> (i32, i32, i32) {
    %c0_i32 = arith.constant 0 : i32
    %c0_i32_0 = arith.constant 0 : i32
    %c0_i32_1 = arith.constant 0 : i32
    return %arg1, %c0_i32, %c0_i32_0 : i32, i32, i32
  }
  func.func @transform_14(%arg0: i32, %arg1: i32) -> (i32, i32) {
    %c0_i32 = arith.constant 0 : i32
    %c0_i32_0 = arith.constant 0 : i32
    %c0_i32_1 = arith.constant 0 : i32
    return %c0_i32, %c0_i32_0 : i32, i32
  }
  func.func @transform_15(%arg0: i32, %arg1: i32) -> (i32, i32) {
    %c0_i32 = arith.constant 0 : i32
    %c0_i32_0 = arith.constant 0 : i32
    %c0_i32_1 = arith.constant 0 : i32
    return %c0_i32, %c0_i32_0 : i32, i32
  }
  func.func @transform_16(%arg0: i32, %arg1: i32) -> (i32, i32, i32) {
    %c0_i32 = arith.constant 0 : i32
    %c0_i32_0 = arith.constant 0 : i32
    %c0_i32_1 = arith.constant 0 : i32
    return %arg0, %c0_i32, %c0_i32_0 : i32, i32, i32
  }
}

</mosaic_0001>

<llo_original>
// kernel: tpu_custom_call.1
$region0: #{tpu_custom_call.1}
  #allocation0 [shape = 'u32[]', space=smem, size = 0x4, offset = 0x4, fixed_abs, tag = 'smem constant byte address 0x4 - core index']
  #allocation1 [shape = 'u32[72,128]{1,0:T(1,128)}', space=vmem, size = 0x9000, scoped, tag = 'internal scratch']
  #allocation2 [shape = 'f32[8,64]{1,0:T(8,128)}', space=vmem, size = 0x1000, scoped, tag = 'scratch operand']
  #allocation3 [shape = 'f32[8,64]{1,0:T(8,128)}', space=vmem, size = 0x1000, scoped, tag = 'scratch operand']
  %s0 = inlined_call_operand.hbm [shape: f32[2,8,64], index: 0, kind: input, shape index: {}]
  %s1 = inlined_call_operand.vmem [shape: f32[2,1,8], index: 1, kind: input, shape index: {}]
  %s2 = inlined_call_operand.vmem [shape: bf16[2,3,64,64], index: 2, kind: input, shape index: {}]
  %s3 = inlined_call_operand.vmem [shape: f32[2,3,64], index: 3, kind: input, shape index: {}]
  %s4 = inlined_call_operand.hbm [shape: bf16[2,64,64], index: 4, kind: input, shape index: {}]
  %s5 = inlined_call_operand.vmem [shape: f32[2,1,64], index: 5, kind: input, shape index: {}]
  %s6 = inlined_call_operand.vmem [shape: f32[2,1,64], index: 6, kind: input, shape index: {}]
  %s7 = inlined_call_operand.vmem [shape: f32[2,1,64], index: 7, kind: input, shape index: {}]
  %s8 = inlined_call_operand.hbm [shape: bf16[2,64,128], index: 8, kind: input, shape index: {}]
  %s9 = inlined_call_operand.vmem [shape: f32[2,1,128], index: 9, kind: input, shape index: {}]
  %s10 = inlined_call_operand.vmem [shape: bf16[2,128,64], index: 10, kind: input, shape index: {}]
  %s11 = inlined_call_operand.vmem [shape: f32[2,1,64], index: 11, kind: input, shape index: {}]
  %s12 = inlined_call_operand.vmem [shape: f32[2,1,64], index: 12, kind: input, shape index: {}]
  %s13 = inlined_call_operand.vmem [shape: f32[2,1,64], index: 13, kind: input, shape index: {}]
  %s14 = inlined_call_operand.vmem [shape: f32[1,64], index: 14, kind: input, shape index: {}]
  %s15 = inlined_call_operand.vmem [shape: f32[1,64], index: 15, kind: input, shape index: {}]
  %s16 = inlined_call_operand.hbm [shape: f32[2,8,64], index: 16, kind: output, shape index: {}]
  %s17 = sld [smem:[#allocation0]]
  $region117: #{tpu_custom_call.1} parent=0
    _
  %s19 = ssub.s32 1, %s17
  %s20 = scalar_select 0, %s19, %s17
  $region1: #{tpu_custom_call.1} parent=0
    #allocation4 [shape = 'u8[8192]{0}', space=vmem, size = 0x2000, scoped, tag = 'input window, operand 0']
    #allocation5 [shape = 's32[2]{0}', space=sflag, size = 0x8, scoped, tag = 'scoped memory for tpu_custom_call.1']
    #allocation6 [shape = 's32[2]{0}', space=sflag, size = 0x8, scoped, tag = 'scoped memory for tpu_custom_call.1']
    #allocation7 [shape = 'u8[32768]{0}', space=vmem, size = 0x8000, scoped, tag = 'input window, operand 4']
    #allocation8 [shape = 's32[2]{0}', space=sflag, size = 0x8, scoped, tag = 'scoped memory for tpu_custom_call.1']
    #allocation9 [shape = 'u8[32768]{0}', space=vmem, size = 0x8000, scoped, tag = 'input window, operand 8']
    #allocation10 [shape = 'u8[8192]{0}', space=vmem, size = 0x2000, scoped, tag = 'output window, operand 0']
    %21 = vsyncpa [#allocation5], 0
    %s22 = scalar_lea.sflag [#allocation5], 1
    %23 = vsyncpa %s22, 0
    %24 = vsyncpa [#allocation8], 0
    %s25 = scalar_lea.sflag [#allocation8], 1
    %26 = vsyncpa %s25, 0
    %27 = vsyncpa [#allocation6], 0
    %s28 = scalar_lea.sflag [#allocation6], 1
    %29 = vsyncpa %s28, 0
    loop: start=0, step=1, limit=6
    $region2: #{tpu_custom_call.1} parent=1 // loop_pre_header
      _
    $region3: #{tpu_custom_call.1} parent=1 // loop_header
      %s31 = sphi 0, %s35
      %p32 = scmp.ge.s32.totalorder %s31, 6
      %s38 = sphi 0, %s50
      %s39 = sphi 0, %s46
      %s40 = sphi 0, %s38
      %s41 = sphi 0, %s39
      %s42 = sphi 0, %s40
      %s43 = sphi 0, %s41
      %s53 = sphi 0, %s55
      %s56 = sphi 0, %s53
      %s57 = sphi 0, %s56
      %s73 = sphi 0, %s57
      %s79 = sphi 0, %s81
      %s82 = sphi 0, %s79
      %s83 = sphi 0, %s82
      %s99 = sphi 0, %s83
      %s105 = sphi 0, %s107
      %s108 = sphi 0, %s105
      %s109 = sphi 0, %s108
      %s125 = sphi 0, %s109
      %s131 = sphi 0, %s133
      %s134 = sphi 0, %s131
      %s135 = sphi 0, %s134
      %s151 = sphi 0, %s135
      %s157 = sphi 0, %s159
      %s160 = sphi 0, %s157
      %s161 = sphi 0, %s160
      %s177 = sphi 0, %s161
      %s183 = sphi 0, %s185
      %s186 = sphi 0, %s183
      %s187 = sphi 0, %s186
      %s203 = sphi 0, %s187
      %s209 = sphi 0, %s211
      %s212 = sphi 0, %s209
      %s213 = sphi 0, %s212
      %s229 = sphi 0, %s213
      %s235 = sphi 0, %s237
      %s238 = sphi 0, %s235
      %s239 = sphi 0, %s238
      %s255 = sphi 0, %s239
      %s261 = sphi 0, %s263
      %s264 = sphi 0, %s261
      %s265 = sphi 0, %s264
      %s281 = sphi 0, %s265
      %s287 = sphi 0, %s289
      %s290 = sphi 0, %s287
      %s291 = sphi 0, %s290
      %s307 = sphi 0, %s291
      %s313 = sphi 0, %s315
      %s316 = sphi 0, %s313
      %s317 = sphi 0, %s316
      %s333 = sphi 0, %s317
      %s339 = sphi 0, %s341
      %s342 = sphi 0, %s339
      %s343 = sphi 0, %s342
      %s359 = sphi 0, %s343
      %s365 = sphi 0, %s367
      %s368 = sphi 0, %s365
      %s369 = sphi 0, %s368
      %s385 = sphi 0, %s369
      %s391 = sphi 0, %s393
      %s394 = sphi 0, %s391
      %s395 = sphi 0, %s394
      %s411 = sphi 0, %s395
      %s415 = sphi 0, %s415
      %s417 = sphi 0, %s415
      %s418 = sphi 0, %s417
      %s432 = sphi 0, %s418
      %s436 = sphi 0, %s436
      %s438 = sphi 0, %s436
      %s439 = sphi 0, %s438
      %s453 = sphi 0, %s439
      %s459 = sphi 0, %s461
      %s462 = sphi 0, %s459
      %s463 = sphi 0, %s462
      %s479 = sphi 0, %s463
    $region4: #{tpu_custom_call.1} parent=1 // loop_header_branch
      %34 = sbr.rel (%p32) target = $region8
    $region5: #{tpu_custom_call.1} parent=1 // loop_body
      %s36 = ssub.s32 %s31, 1
      %s37 = ssub.s32 %s31, 2
      %s44 = sadd.s32 1, %s39
      %p45 = scmp.ge.s32.totalorder %s44, 2
      %s46 = scalar_select %p45, 0, %s44
      %s47 = sadd.s32 1, %s38
      %s48 = scalar_select %p45, %s47, %s38
      %p49 = scmp.ge.s32.totalorder %s48, 2
      %s50 = scalar_select %p49, 0, %s48
      %s51 = ssub.s32 %s38, %s50
      %p52 = scmp.eq.s32.totalorder %s51, 0
      %s54 = sadd.s32 %s53, 1
      %s55 = scalar_select %p52, %s53, %s54
      %p58 = pneg %p52
      %p59 = scmp.eq.s32.totalorder %s31, 3
      %p60 = por %p58, %p59
      %p61 = scmp.ne.s32.totalorder %s53, %s56
      %p62 = scmp.eq.s32.totalorder %s31, 0
      %p63 = por %p61, %p62
      %p64 = scmp.ne.s32.totalorder %s53, %s56
      %p65 = scmp.eq.s32.totalorder %s36, 3
      %p66 = por %p64, %p65
      %p67 = scmp.ne.s32.totalorder %s56, %s57
      %p68 = scmp.eq.s32.totalorder %s36, 0
      %p69 = por %p67, %p68
      %p70 = scmp.ne.s32.totalorder %s56, %s57
      %p71 = scmp.eq.s32.totalorder %s37, 3
      %p72 = por %p70, %p71
      %p74 = scmp.ne.s32.totalorder %s57, %s73
      %p75 = scmp.eq.s32.totalorder %s37, 0
      %p76 = por %p74, %p75
      %s77 = ssub.s32 %s38, %s50
      %p78 = scmp.eq.s32.totalorder %s77, 0
      %s80 = sadd.s32 %s79, 1
      %s81 = scalar_select %p78, %s79, %s80
      %p84 = pneg %p78
      %p85 = scmp.eq.s32.totalorder %s31, 3
      %p86 = por %p84, %p85
      %p87 = scmp.ne.s32.totalorder %s79, %s82
      %p88 = scmp.eq.s32.totalorder %s31, 0
      %p89 = por %p87, %p88
      %p90 = scmp.ne.s32.totalorder %s79, %s82
      %p91 = scmp.eq.s32.totalorder %s36, 3
      %p92 = por %p90, %p91
      %p93 = scmp.ne.s32.totalorder %s82, %s83
      %p94 = scmp.eq.s32.totalorder %s36, 0
      %p95 = por %p93, %p94
      %p96 = scmp.ne.s32.totalorder %s82, %s83
      %p97 = scmp.eq.s32.totalorder %s37, 3
      %p98 = por %p96, %p97
      %p100 = scmp.ne.s32.totalorder %s83, %s99
      %p101 = scmp.eq.s32.totalorder %s37, 0
      %p102 = por %p100, %p101
      %s103 = ssub.s32 %s39, %s46
      %p104 = scmp.eq.s32.totalorder %s103, 0
      %s106 = sadd.s32 %s105, 1
      %s107 = scalar_select %p104, %s105, %s106
      %p110 = pneg %p104
      %p111 = scmp.eq.s32.totalorder %s31, 3
      %p112 = por %p110, %p111
      %p113 = scmp.ne.s32.totalorder %s105, %s108
      %p114 = scmp.eq.s32.totalorder %s31, 0
      %p115 = por %p113, %p114
      %p116 = scmp.ne.s32.totalorder %s105, %s108
      %p117 = scmp.eq.s32.totalorder %s36, 3
      %p118 = por %p116, %p117
      %p119 = scmp.ne.s32.totalorder %s108, %s109
      %p120 = scmp.eq.s32.totalorder %s36, 0
      %p121 = por %p119, %p120
      %p122 = scmp.ne.s32.totalorder %s108, %s109
      %p123 = scmp.eq.s32.totalorder %s37, 3
      %p124 = por %p122, %p123
      %p126 = scmp.ne.s32.totalorder %s109, %s125
      %p127 = scmp.eq.s32.totalorder %s37, 0
      %p128 = por %p126, %p127
      %s129 = ssub.s32 %s39, %s46
      %p130 = scmp.eq.s32.totalorder %s129, 0
      %s132 = sadd.s32 %s131, 1
      %s133 = scalar_select %p130, %s131, %s132
      %p136 = pneg %p130
      %p137 = scmp.eq.s32.totalorder %s31, 3
      %p138 = por %p136, %p137
      %p139 = scmp.ne.s32.totalorder %s131, %s134
      %p140 = scmp.eq.s32.totalorder %s31, 0
      %p141 = por %p139, %p140
      %p142 = scmp.ne.s32.totalorder %s131, %s134
      %p143 = scmp.eq.s32.totalorder %s36, 3
      %p144 = por %p142, %p143
      %p145 = scmp.ne.s32.totalorder %s134, %s135
      %p146 = scmp.eq.s32.totalorder %s36, 0
      %p147 = por %p145, %p146
      %p148 = scmp.ne.s32.totalorder %s134, %s135
      %p149 = scmp.eq.s32.totalorder %s37, 3
      %p150 = por %p148, %p149
      %p152 = scmp.ne.s32.totalorder %s135, %s151
      %p153 = scmp.eq.s32.totalorder %s37, 0
      %p154 = por %p152, %p153
      %s155 = ssub.s32 %s39, %s46
      %p156 = scmp.eq.s32.totalorder %s155, 0
      %s158 = sadd.s32 %s157, 1
      %s159 = scalar_select %p156, %s157, %s158
      %p162 = pneg %p156
      %p163 = scmp.eq.s32.totalorder %s31, 3
      %p164 = por %p162, %p163
      %p165 = scmp.ne.s32.totalorder %s157, %s160
      %p166 = scmp.eq.s32.totalorder %s31, 0
      %p167 = por %p165, %p166
      %p168 = scmp.ne.s32.totalorder %s157, %s160
      %p169 = scmp.eq.s32.totalorder %s36, 3
      %p170 = por %p168, %p169
      %p171 = scmp.ne.s32.totalorder %s160, %s161
      %p172 = scmp.eq.s32.totalorder %s36, 0
      %p173 = por %p171, %p172
      %p174 = scmp.ne.s32.totalorder %s160, %s161
      %p175 = scmp.eq.s32.totalorder %s37, 3
      %p176 = por %p174, %p175
      %p178 = scmp.ne.s32.totalorder %s161, %s177
      %p179 = scmp.eq.s32.totalorder %s37, 0
      %p180 = por %p178, %p179
      %s181 = ssub.s32 %s39, %s46
      %p182 = scmp.eq.s32.totalorder %s181, 0
      %s184 = sadd.s32 %s183, 1
      %s185 = scalar_select %p182, %s183, %s184
      %p188 = pneg %p182
      %p189 = scmp.eq.s32.totalorder %s31, 3
      %p190 = por %p188, %p189
      %p191 = scmp.ne.s32.totalorder %s183, %s186
      %p192 = scmp.eq.s32.totalorder %s31, 0
      %p193 = por %p191, %p192
      %p194 = scmp.ne.s32.totalorder %s183, %s186
      %p195 = scmp.eq.s32.totalorder %s36, 3
      %p196 = por %p194, %p195
      %p197 = scmp.ne.s32.totalorder %s186, %s187
      %p198 = scmp.eq.s32.totalorder %s36, 0
      %p199 = por %p197, %p198
      %p200 = scmp.ne.s32.totalorder %s186, %s187
      %p201 = scmp.eq.s32.totalorder %s37, 3
      %p202 = por %p200, %p201
      %p204 = scmp.ne.s32.totalorder %s187, %s203
      %p205 = scmp.eq.s32.totalorder %s37, 0
      %p206 = por %p204, %p205
      %s207 = ssub.s32 %s39, %s46
      %p208 = scmp.eq.s32.totalorder %s207, 0
      %s210 = sadd.s32 %s209, 1
      %s211 = scalar_select %p208, %s209, %s210
      %p214 = pneg %p208
      %p215 = scmp.eq.s32.totalorder %s31, 3
      %p216 = por %p214, %p215
      %p217 = scmp.ne.s32.totalorder %s209, %s212
      %p218 = scmp.eq.s32.totalorder %s31, 0
      %p219 = por %p217, %p218
      %p220 = scmp.ne.s32.totalorder %s209, %s212
      %p221 = scmp.eq.s32.totalorder %s36, 3
      %p222 = por %p220, %p221
      %p223 = scmp.ne.s32.totalorder %s212, %s213
      %p224 = scmp.eq.s32.totalorder %s36, 0
      %p225 = por %p223, %p224
      %p226 = scmp.ne.s32.totalorder %s212, %s213
      %p227 = scmp.eq.s32.totalorder %s37, 3
      %p228 = por %p226, %p227
      %p230 = scmp.ne.s32.totalorder %s213, %s229
      %p231 = scmp.eq.s32.totalorder %s37, 0
      %p232 = por %p230, %p231
      %s233 = ssub.s32 %s39, %s46
      %p234 = scmp.eq.s32.totalorder %s233, 0
      %s236 = sadd.s32 %s235, 1
      %s237 = scalar_select %p234, %s235, %s236
      %p240 = pneg %p234
      %p241 = scmp.eq.s32.totalorder %s31, 3
      %p242 = por %p240, %p241
      %p243 = scmp.ne.s32.totalorder %s235, %s238
      %p244 = scmp.eq.s32.totalorder %s31, 0
      %p245 = por %p243, %p244
      %p246 = scmp.ne.s32.totalorder %s235, %s238
      %p247 = scmp.eq.s32.totalorder %s36, 3
      %p248 = por %p246, %p247
      %p249 = scmp.ne.s32.totalorder %s238, %s239
      %p250 = scmp.eq.s32.totalorder %s36, 0
      %p251 = por %p249, %p250
      %p252 = scmp.ne.s32.totalorder %s238, %s239
      %p253 = scmp.eq.s32.totalorder %s37, 3
      %p254 = por %p252, %p253
      %p256 = scmp.ne.s32.totalorder %s239, %s255
      %p257 = scmp.eq.s32.totalorder %s37, 0
      %p258 = por %p256, %p257
      %s259 = ssub.s32 %s39, %s46
      %p260 = scmp.eq.s32.totalorder %s259, 0
      %s262 = sadd.s32 %s261, 1
      %s263 = scalar_select %p260, %s261, %s262
      %p266 = pneg %p260
      %p267 = scmp.eq.s32.totalorder %s31, 3
      %p268 = por %p266, %p267
      %p269 = scmp.ne.s32.totalorder %s261, %s264
      %p270 = scmp.eq.s32.totalorder %s31, 0
      %p271 = por %p269, %p270
      %p272 = scmp.ne.s32.totalorder %s261, %s264
      %p273 = scmp.eq.s32.totalorder %s36, 3
      %p274 = por %p272, %p273
      %p275 = scmp.ne.s32.totalorder %s264, %s265
      %p276 = scmp.eq.s32.totalorder %s36, 0
      %p277 = por %p275, %p276
      %p278 = scmp.ne.s32.totalorder %s264, %s265
      %p279 = scmp.eq.s32.totalorder %s37, 3
      %p280 = por %p278, %p279
      %p282 = scmp.ne.s32.totalorder %s265, %s281
      %p283 = scmp.eq.s32.totalorder %s37, 0
      %p284 = por %p282, %p283
      %s285 = ssub.s32 %s39, %s46
      %p286 = scmp.eq.s32.totalorder %s285, 0
      %s288 = sadd.s32 %s287, 1
      %s289 = scalar_select %p286, %s287, %s288
      %p292 = pneg %p286
      %p293 = scmp.eq.s32.totalorder %s31, 3
      %p294 = por %p292, %p293
      %p295 = scmp.ne.s32.totalorder %s287, %s290
      %p296 = scmp.eq.s32.totalorder %s31, 0
      %p297 = por %p295, %p296
      %p298 = scmp.ne.s32.totalorder %s287, %s290
      %p299 = scmp.eq.s32.totalorder %s36, 3
      %p300 = por %p298, %p299
      %p301 = scmp.ne.s32.totalorder %s290, %s291
      %p302 = scmp.eq.s32.totalorder %s36, 0
      %p303 = por %p301, %p302
      %p304 = scmp.ne.s32.totalorder %s290, %s291
      %p305 = scmp.eq.s32.totalorder %s37, 3
      %p306 = por %p304, %p305
      %p308 = scmp.ne.s32.totalorder %s291, %s307
      %p309 = scmp.eq.s32.totalorder %s37, 0
      %p310 = por %p308, %p309
      %s311 = ssub.s32 %s39, %s46
      %p312 = scmp.eq.s32.totalorder %s311, 0
      %s314 = sadd.s32 %s313, 1
      %s315 = scalar_select %p312, %s313, %s314
      %p318 = pneg %p312
      %p319 = scmp.eq.s32.totalorder %s31, 3
      %p320 = por %p318, %p319
      %p321 = scmp.ne.s32.totalorder %s313, %s316
      %p322 = scmp.eq.s32.totalorder %s31, 0
      %p323 = por %p321, %p322
      %p324 = scmp.ne.s32.totalorder %s313, %s316
      %p325 = scmp.eq.s32.totalorder %s36, 3
      %p326 = por %p324, %p325
      %p327 = scmp.ne.s32.totalorder %s316, %s317
      %p328 = scmp.eq.s32.totalorder %s36, 0
      %p329 = por %p327, %p328
      %p330 = scmp.ne.s32.totalorder %s316, %s317
      %p331 = scmp.eq.s32.totalorder %s37, 3
      %p332 = por %p330, %p331
      %p334 = scmp.ne.s32.totalorder %s317, %s333
      %p335 = scmp.eq.s32.totalorder %s37, 0
      %p336 = por %p334, %p335
      %s337 = ssub.s32 %s39, %s46
      %p338 = scmp.eq.s32.totalorder %s337, 0
      %s340 = sadd.s32 %s339, 1
      %s341 = scalar_select %p338, %s339, %s340
      %p344 = pneg %p338
      %p345 = scmp.eq.s32.totalorder %s31, 3
      %p346 = por %p344, %p345
      %p347 = scmp.ne.s32.totalorder %s339, %s342
      %p348 = scmp.eq.s32.totalorder %s31, 0
      %p349 = por %p347, %p348
      %p350 = scmp.ne.s32.totalorder %s339, %s342
      %p351 = scmp.eq.s32.totalorder %s36, 3
      %p352 = por %p350, %p351
      %p353 = scmp.ne.s32.totalorder %s342, %s343
      %p354 = scmp.eq.s32.totalorder %s36, 0
      %p355 = por %p353, %p354
      %p356 = scmp.ne.s32.totalorder %s342, %s343
      %p357 = scmp.eq.s32.totalorder %s37, 3
      %p358 = por %p356, %p357
      %p360 = scmp.ne.s32.totalorder %s343, %s359
      %p361 = scmp.eq.s32.totalorder %s37, 0
      %p362 = por %p360, %p361
      %s363 = ssub.s32 %s39, %s46
      %p364 = scmp.eq.s32.totalorder %s363, 0
      %s366 = sadd.s32 %s365, 1
      %s367 = scalar_select %p364, %s365, %s366
      %p370 = pneg %p364
      %p371 = scmp.eq.s32.totalorder %s31, 3
      %p372 = por %p370, %p371
      %p373 = scmp.ne.s32.totalorder %s365, %s368
      %p374 = scmp.eq.s32.totalorder %s31, 0
      %p375 = por %p373, %p374
      %p376 = scmp.ne.s32.totalorder %s365, %s368
      %p377 = scmp.eq.s32.totalorder %s36, 3
      %p378 = por %p376, %p377
      %p379 = scmp.ne.s32.totalorder %s368, %s369
      %p380 = scmp.eq.s32.totalorder %s36, 0
      %p381 = por %p379, %p380
      %p382 = scmp.ne.s32.totalorder %s368, %s369
      %p383 = scmp.eq.s32.totalorder %s37, 3
      %p384 = por %p382, %p383
      %p386 = scmp.ne.s32.totalorder %s369, %s385
      %p387 = scmp.eq.s32.totalorder %s37, 0
      %p388 = por %p386, %p387
      %s389 = ssub.s32 %s39, %s46
      %p390 = scmp.eq.s32.totalorder %s389, 0
      %s392 = sadd.s32 %s391, 1
      %s393 = scalar_select %p390, %s391, %s392
      %p396 = pneg %p390
      %p397 = scmp.eq.s32.totalorder %s31, 3
      %p398 = por %p396, %p397
      %p399 = scmp.ne.s32.totalorder %s391, %s394
      %p400 = scmp.eq.s32.totalorder %s31, 0
      %p401 = por %p399, %p400
      %p402 = scmp.ne.s32.totalorder %s391, %s394
      %p403 = scmp.eq.s32.totalorder %s36, 3
      %p404 = por %p402, %p403
      %p405 = scmp.ne.s32.totalorder %s394, %s395
      %p406 = scmp.eq.s32.totalorder %s36, 0
      %p407 = por %p405, %p406
      %p408 = scmp.ne.s32.totalorder %s394, %s395
      %p409 = scmp.eq.s32.totalorder %s37, 3
      %p410 = por %p408, %p409
      %p412 = scmp.ne.s32.totalorder %s395, %s411
      %p413 = scmp.eq.s32.totalorder %s37, 0
      %p414 = por %p412, %p413
      %s416 = sadd.s32 %s415, 1
      %p419 = scmp.eq.s32.totalorder %s31, 3
      %p420 = scmp.ne.s32.totalorder %s415, %s417
      %p421 = scmp.eq.s32.totalorder %s31, 0
      %p422 = por %p420, %p421
      %p423 = scmp.ne.s32.totalorder %s415, %s417
      %p424 = scmp.eq.s32.totalorder %s36, 3
      %p425 = por %p423, %p424
      %p426 = scmp.ne.s32.totalorder %s417, %s418
      %p427 = scmp.eq.s32.totalorder %s36, 0
      %p428 = por %p426, %p427
      %p429 = scmp.ne.s32.totalorder %s417, %s418
      %p430 = scmp.eq.s32.totalorder %s37, 3
      %p431 = por %p429, %p430
      %p433 = scmp.ne.s32.totalorder %s418, %s432
      %p434 = scmp.eq.s32.totalorder %s37, 0
      %p435 = por %p433, %p434
      %s437 = sadd.s32 %s436, 1
      %p440 = scmp.eq.s32.totalorder %s31, 3
      %p441 = scmp.ne.s32.totalorder %s436, %s438
      %p442 = scmp.eq.s32.totalorder %s31, 0
      %p443 = por %p441, %p442
      %p444 = scmp.ne.s32.totalorder %s436, %s438
      %p445 = scmp.eq.s32.totalorder %s36, 3
      %p446 = por %p444, %p445
      %p447 = scmp.ne.s32.totalorder %s438, %s439
      %p448 = scmp.eq.s32.totalorder %s36, 0
      %p449 = por %p447, %p448
      %p450 = scmp.ne.s32.totalorder %s438, %s439
      %p451 = scmp.eq.s32.totalorder %s37, 3
      %p452 = por %p450, %p451
      %p454 = scmp.ne.s32.totalorder %s439, %s453
      %p455 = scmp.eq.s32.totalorder %s37, 0
      %p456 = por %p454, %p455
      %s457 = ssub.s32 %s38, %s50
      %p458 = scmp.eq.s32.totalorder %s457, 0
      %s460 = sadd.s32 %s459, 1
      %s461 = scalar_select %p458, %s459, %s460
      %p464 = pneg %p458
      %p465 = scmp.eq.s32.totalorder %s31, 3
      %p466 = por %p464, %p465
      %p467 = scmp.ne.s32.totalorder %s459, %s462
      %p468 = scmp.eq.s32.totalorder %s31, 0
      %p469 = por %p467, %p468
      %p470 = scmp.ne.s32.totalorder %s459, %s462
      %p471 = scmp.eq.s32.totalorder %s36, 3
      %p472 = por %p470, %p471
      %p473 = scmp.ne.s32.totalorder %s462, %s463
      %p474 = scmp.eq.s32.totalorder %s36, 0
      %p475 = por %p473, %p474
      %p476 = scmp.ne.s32.totalorder %s462, %s463
      %p477 = scmp.eq.s32.totalorder %s37, 3
      %p478 = por %p476, %p477
      %p480 = scmp.ne.s32.totalorder %s463, %s479
      %p481 = scmp.eq.s32.totalorder %s37, 0
      %p482 = por %p480, %p481
      %p483 = scmp.le.s32.totalorder 1, %s31
      %p484 = scmp.lt.s32.totalorder %s31, 5
      %p485 = pnand %p483, %p484
      %p486 = pneg %p485
      // Predicated region
      $region9: #{tpu_custom_call.1} parent=5 // pred_check
        _
      $region10: #{tpu_custom_call.1} parent=5 // pred_check_branch
        %488 = sbr.rel (%p485) target = $region12
      $region11: #{tpu_custom_call.1} parent=5 // pred_region
        %s489 = ssub.s32 %s31, 1
        // Predicated region
        $region13: #{tpu_custom_call.1} parent=11 // pred_check
          %p490 = pneg %p428
        $region14: #{tpu_custom_call.1} parent=11 // pred_check_branch
          %492 = sbr.rel (%p490) target = $region16
        $region15: #{tpu_custom_call.1} parent=11 // pred_region
          _
        $region16: #{tpu_custom_call.1} parent=11 // pred_fallthru
          _
        // Predicated region
        $region17: #{tpu_custom_call.1} parent=11 // pred_check
          %p493 = pneg %p449
        $region18: #{tpu_custom_call.1} parent=11 // pred_check_branch
          %495 = sbr.rel (%p493) target = $region20
        $region19: #{tpu_custom_call.1} parent=11 // pred_region
          _
        $region20: #{tpu_custom_call.1} parent=11 // pred_fallthru
          _
      $region12: #{tpu_custom_call.1} parent=5 // pred_fallthru
        _
      %p496 = scmp.lt.s32.totalorder %s31, 4
      // Predicated region
      $region21: #{tpu_custom_call.1} parent=5 // pred_check
        %p497 = pneg %p496
      $region22: #{tpu_custom_call.1} parent=5 // pred_check_branch
        %499 = sbr.rel (%p497) target = $region24
      $region23: #{tpu_custom_call.1} parent=5 // pred_region
        // Predicated region
        $region25: #{tpu_custom_call.1} parent=23 // pred_check
          %p500 = pneg %p63
        $region26: #{tpu_custom_call.1} parent=23 // pred_check_branch
          %502 = sbr.rel (%p500) target = $region28
        $region27: #{tpu_custom_call.1} parent=23 // pred_region
          %s503 = sand.u32 %s53, 1
          %s504 = scalar_lea.sflag [#allocation5], %s503
          %s505 = sand.u32 %s53, 1
          %s506 = smul.addr %s505, 8
          %s507 = scalar_lea.vmem [#allocation4], %s506
          %509 = vsyncadd %s504, 0
          %s510 = smul.addr %s38, 8
          %s511 = scalar_lea.hbm %s0, %s510
          %s513 = sshll.u32 %s511, 4
          %s514 = int_to_ptr.hbm [resolvable:$true] %s513
          %s515 = sshll.u32 %s507, 4
          %s516 = int_to_ptr.vmem [resolvable:$true] %s515
          %518 = dma.hbm_to_vmem [thread:$0]  %s514, 128, %s516, %s504
        $region28: #{tpu_custom_call.1} parent=23 // pred_fallthru
          _
        // Predicated region
        $region29: #{tpu_custom_call.1} parent=23 // pred_check
          %p519 = pneg %p89
        $region30: #{tpu_custom_call.1} parent=23 // pred_check_branch
          %521 = sbr.rel (%p519) target = $region32
        $region31: #{tpu_custom_call.1} parent=23 // pred_region
          %p522 = scmp.lt.s32.totalorder %s38, 1
          %s523 = scalar_select %p522, %s38, 1
          %s524 = scalar_lea.vmem %s1, %s523
        $region32: #{tpu_custom_call.1} parent=23 // pred_fallthru
          _
        // Predicated region
        $region33: #{tpu_custom_call.1} parent=23 // pred_check
          %p525 = pneg %p115
        $region34: #{tpu_custom_call.1} parent=23 // pred_check_branch
          %527 = sbr.rel (%p525) target = $region36
        $region35: #{tpu_custom_call.1} parent=23 // pred_region
          %p528 = scmp.lt.s32.totalorder %s39, 1
          %s529 = scalar_select %p528, %s39, 1
          %s530 = smul.addr %s529, 24
          %s531 = smul.addr %s530, 4
          %s532 = scalar_lea.vmem %s2, %s531
        $region36: #{tpu_custom_call.1} parent=23 // pred_fallthru
          _
        // Predicated region
        $region37: #{tpu_custom_call.1} parent=23 // pred_check
          %p533 = pneg %p141
        $region38: #{tpu_custom_call.1} parent=23 // pred_check_branch
          %535 = sbr.rel (%p533) target = $region40
        $region39: #{tpu_custom_call.1} parent=23 // pred_region
          %p536 = scmp.lt.s32.totalorder %s39, 1
          %s537 = scalar_select %p536, %s39, 1
          %s538 = smul.addr %s537, 4
          %s539 = scalar_lea.vmem %s3, %s538
        $region40: #{tpu_custom_call.1} parent=23 // pred_fallthru
          _
        // Predicated region
        $region41: #{tpu_custom_call.1} parent=23 // pred_check
          %p540 = pneg %p167
        $region42: #{tpu_custom_call.1} parent=23 // pred_check_branch
          %542 = sbr.rel (%p540) target = $region44
        $region43: #{tpu_custom_call.1} parent=23 // pred_region
          %s543 = sand.u32 %s31, 1
          %s544 = scalar_lea.sflag [#allocation8], %s543
          %s545 = sand.u32 %s157, 1
          %s546 = smul.addr %s545, 32
          %s547 = scalar_lea.vmem [#allocation7], %s546
          %549 = vsyncadd %s544, 0
          %s550 = smul.addr %s39, 8
          %s551 = smul.addr %s550, 4
          %s552 = scalar_lea.hbm %s4, %s551
          %s553 = sshll.u32 %s552, 4
          %s554 = int_to_ptr.hbm [resolvable:$true] %s553
          %s555 = sshll.u32 %s547, 4
          %s556 = int_to_ptr.vmem [resolvable:$true] %s555
          %561 = dma.hbm_to_vmem [thread:$0]  %s554, 512, %s556, %s544, 64, 64, 4
        $region44: #{tpu_custom_call.1} parent=23 // pred_fallthru
          _
        // Predicated region
        $region45: #{tpu_custom_call.1} parent=23 // pred_check
          %p562 = pneg %p193
        $region46: #{tpu_custom_call.1} parent=23 // pred_check_branch
          %564 = sbr.rel (%p562) target = $region48
        $region47: #{tpu_custom_call.1} parent=23 // pred_region
          %p565 = scmp.lt.s32.totalorder %s39, 1
          %s566 = scalar_select %p565, %s39, 1
          %s567 = scalar_lea.vmem %s5, %s566
        $region48: #{tpu_custom_call.1} parent=23 // pred_fallthru
          _
        // Predicated region
        $region49: #{tpu_custom_call.1} parent=23 // pred_check
          %p568 = pneg %p219
        $region50: #{tpu_custom_call.1} parent=23 // pred_check_branch
          %570 = sbr.rel (%p568) target = $region52
        $region51: #{tpu_custom_call.1} parent=23 // pred_region
          %p571 = scmp.lt.s32.totalorder %s39, 1
          %s572 = scalar_select %p571, %s39, 1
          %s573 = scalar_lea.vmem %s6, %s572
        $region52: #{tpu_custom_call.1} parent=23 // pred_fallthru
          _
        // Predicated region
        $region53: #{tpu_custom_call.1} parent=23 // pred_check
          %p574 = pneg %p245
        $region54: #{tpu_custom_call.1} parent=23 // pred_check_branch
          %576 = sbr.rel (%p574) target = $region56
        $region55: #{tpu_custom_call.1} parent=23 // pred_region
          %p577 = scmp.lt.s32.totalorder %s39, 1
          %s578 = scalar_select %p577, %s39, 1
          %s579 = scalar_lea.vmem %s7, %s578
        $region56: #{tpu_custom_call.1} parent=23 // pred_fallthru
          _
        // Predicated region
        $region57: #{tpu_custom_call.1} parent=23 // pred_check
          %p580 = pneg %p271
        $region58: #{tpu_custom_call.1} parent=23 // pred_check_branch
          %582 = sbr.rel (%p580) target = $region60
        $region59: #{tpu_custom_call.1} parent=23 // pred_region
          %s583 = sand.u32 %s31, 1
          %s584 = scalar_lea.sflag [#allocation8], %s583
          %s585 = sand.u32 %s261, 1
          %s586 = smul.addr %s585, 32
          %s587 = scalar_lea.vmem [#allocation9], %s586
          %589 = vsyncadd %s584, 0
          %s590 = smul.addr %s39, 8
          %s591 = smul.addr %s590, 4
          %s592 = scalar_lea.hbm %s8, %s591
          %s593 = sshll.u32 %s592, 4
          %s594 = int_to_ptr.hbm [resolvable:$true] %s593
          %s595 = sshll.u32 %s587, 4
          %s596 = int_to_ptr.vmem [resolvable:$true] %s595
          %601 = dma.hbm_to_vmem [thread:$0]  %s594, 512, %s596, %s584, 64, 64, 4
        $region60: #{tpu_custom_call.1} parent=23 // pred_fallthru
          _
        // Predicated region
        $region61: #{tpu_custom_call.1} parent=23 // pred_check
          %p602 = pneg %p297
        $region62: #{tpu_custom_call.1} parent=23 // pred_check_branch
          %604 = sbr.rel (%p602) target = $region64
        $region63: #{tpu_custom_call.1} parent=23 // pred_region
          %p605 = scmp.lt.s32.totalorder %s39, 1
          %s606 = scalar_select %p605, %s39, 1
          %s607 = scalar_lea.vmem %s9, %s606
        $region64: #{tpu_custom_call.1} parent=23 // pred_fallthru
          _
        // Predicated region
        $region65: #{tpu_custom_call.1} parent=23 // pred_check
          %p608 = pneg %p323
        $region66: #{tpu_custom_call.1} parent=23 // pred_check_branch
          %610 = sbr.rel (%p608) target = $region68
        $region67: #{tpu_custom_call.1} parent=23 // pred_region
          %p611 = scmp.lt.s32.totalorder %s39, 1
          %s612 = scalar_select %p611, %s39, 1
          %s613 = smul.addr %s612, 16
          %s614 = smul.addr %s613, 4
          %s615 = scalar_lea.vmem %s10, %s614
        $region68: #{tpu_custom_call.1} parent=23 // pred_fallthru
          _
        // Predicated region
        $region69: #{tpu_custom_call.1} parent=23 // pred_check
          %p616 = pneg %p349
        $region70: #{tpu_custom_call.1} parent=23 // pred_check_branch
          %618 = sbr.rel (%p616) target = $region72
        $region71: #{tpu_custom_call.1} parent=23 // pred_region
          %p619 = scmp.lt.s32.totalorder %s39, 1
          %s620 = scalar_select %p619, %s39, 1
          %s621 = scalar_lea.vmem %s11, %s620
        $region72: #{tpu_custom_call.1} parent=23 // pred_fallthru
          _
        // Predicated region
        $region73: #{tpu_custom_call.1} parent=23 // pred_check
          %p622 = pneg %p375
        $region74: #{tpu_custom_call.1} parent=23 // pred_check_branch
          %624 = sbr.rel (%p622) target = $region76
        $region75: #{tpu_custom_call.1} parent=23 // pred_region
          %p625 = scmp.lt.s32.totalorder %s39, 1
          %s626 = scalar_select %p625, %s39, 1
          %s627 = scalar_lea.vmem %s12, %s626
        $region76: #{tpu_custom_call.1} parent=23 // pred_fallthru
          _
        // Predicated region
        $region77: #{tpu_custom_call.1} parent=23 // pred_check
          %p628 = pneg %p401
        $region78: #{tpu_custom_call.1} parent=23 // pred_check_branch
          %630 = sbr.rel (%p628) target = $region80
        $region79: #{tpu_custom_call.1} parent=23 // pred_region
          %p631 = scmp.lt.s32.totalorder %s39, 1
          %s632 = scalar_select %p631, %s39, 1
          %s633 = scalar_lea.vmem %s13, %s632
        $region80: #{tpu_custom_call.1} parent=23 // pred_fallthru
          _
      $region24: #{tpu_custom_call.1} parent=5 // pred_fallthru
        _
      %p634 = scmp.le.s32.totalorder 1, %s31
      %p635 = scmp.lt.s32.totalorder %s31, 5
      %p636 = pnand %p634, %p635
      %p637 = pneg %p636
      // Predicated region
      $region81: #{tpu_custom_call.1} parent=5 // pred_check
        _
      $region82: #{tpu_custom_call.1} parent=5 // pred_check_branch
        %639 = sbr.rel (%p636) target = $region84
      $region83: #{tpu_custom_call.1} parent=5 // pred_region
        %s640 = ssub.s32 %s31, 1
        %s641 = sand.u32 %s56, 1
        %s642 = scalar_lea.sflag [#allocation5], %s641
        %s643 = sand.u32 %s56, 1
        %s644 = smul.addr %s643, 8
        %s645 = scalar_lea.vmem [#allocation4], %s644
        // Predicated region
        $region85: #{tpu_custom_call.1} parent=83 // pred_check
          %p646 = pneg %p69
        $region86: #{tpu_custom_call.1} parent=83 // pred_check_branch
          %648 = sbr.rel (%p646) target = $region88
        $region87: #{tpu_custom_call.1} parent=83 // pred_region
          %650 = dma.done %s642, 128
        $region88: #{tpu_custom_call.1} parent=83 // pred_fallthru
          _
        %s651 = sand.u32 %s36, 1
        %s652 = scalar_lea.sflag [#allocation8], %s651
        %s653 = sand.u32 %s160, 1
        %s654 = smul.addr %s653, 32
        %s655 = scalar_lea.vmem [#allocation7], %s654
        // Predicated region
        $region89: #{tpu_custom_call.1} parent=83 // pred_check
          %p656 = pneg %p173
        $region90: #{tpu_custom_call.1} parent=83 // pred_check_branch
          %658 = sbr.rel (%p656) target = $region92
        $region91: #{tpu_custom_call.1} parent=83 // pred_region
          %660 = dma.done %s652, 512
        $region92: #{tpu_custom_call.1} parent=83 // pred_fallthru
          _
        %s661 = sand.u32 %s36, 1
        %s662 = scalar_lea.sflag [#allocation8], %s661
        %s663 = sand.u32 %s264, 1
        %s664 = smul.addr %s663, 32
        %s665 = scalar_lea.vmem [#allocation9], %s664
        // Predicated region
        $region93: #{tpu_custom_call.1} parent=83 // pred_check
          %p666 = pneg %p277
        $region94: #{tpu_custom_call.1} parent=83 // pred_check_branch
          %668 = sbr.rel (%p666) target = $region96
        $region95: #{tpu_custom_call.1} parent=83 // pred_region
          %670 = dma.done %s662, 512
        $region96: #{tpu_custom_call.1} parent=83 // pred_fallthru
          _
        %s671 = sand.u32 %s56, 1
        %s672 = scalar_lea.sflag [#allocation5], %s671
        %s673 = sand.u32 %s56, 1
        %s674 = smul.addr %s673, 8
        %s675 = scalar_lea.vmem [#allocation4], %s674
        %p676 = pneg %p69
        %p677 = pneg %p66
        %p678 = scmp.lt.s32.totalorder %s40, 1
        %s679 = scalar_select %p678, %s40, 1
        %s680 = scalar_lea.vmem %s1, %s679
        %p681 = pneg %p95
        %p682 = pneg %p92
        %p683 = scmp.lt.s32.totalorder %s41, 1
        %s684 = scalar_select %p683, %s41, 1
        %s685 = smul.addr %s684, 24
        %s686 = smul.addr %s685, 4
        %s687 = scalar_lea.vmem %s2, %s686
        %p688 = pneg %p121
        %p689 = pneg %p118
        %p690 = scmp.lt.s32.totalorder %s41, 1
        %s691 = scalar_select %p690, %s41, 1
        %s692 = smul.addr %s691, 4
        %s693 = scalar_lea.vmem %s3, %s692
        %p694 = pneg %p147
        %p695 = pneg %p144
        %s696 = sand.u32 %s36, 1
        %s697 = scalar_lea.sflag [#allocation8], %s696
        %s698 = sand.u32 %s160, 1
        %s699 = smul.addr %s698, 32
        %s700 = scalar_lea.vmem [#allocation7], %s699
        %p701 = pneg %p173
        %p702 = pneg %p170
        %p703 = scmp.lt.s32.totalorder %s41, 1
        %s704 = scalar_select %p703, %s41, 1
        %s705 = scalar_lea.vmem %s5, %s704
        %p706 = pneg %p199
        %p707 = pneg %p196
        %p708 = scmp.lt.s32.totalorder %s41, 1
        %s709 = scalar_select %p708, %s41, 1
        %s710 = scalar_lea.vmem %s6, %s709
        %p711 = pneg %p225
        %p712 = pneg %p222
        %p713 = scmp.lt.s32.totalorder %s41, 1
        %s714 = scalar_select %p713, %s41, 1
        %s715 = scalar_lea.vmem %s7, %s714
        %p716 = pneg %p251
        %p717 = pneg %p248
        %s718 = sand.u32 %s36, 1
        %s719 = scalar_lea.sflag [#allocation8], %s718
        %s720 = sand.u32 %s264, 1
        %s721 = smul.addr %s720, 32
        %s722 = scalar_lea.vmem [#allocation9], %s721
        %p723 = pneg %p277
        %p724 = pneg %p274
        %p725 = scmp.lt.s32.totalorder %s41, 1
        %s726 = scalar_select %p725, %s41, 1
        %s727 = scalar_lea.vmem %s9, %s726
        %p728 = pneg %p303
        %p729 = pneg %p300
        %p730 = scmp.lt.s32.totalorder %s41, 1
        %s731 = scalar_select %p730, %s41, 1
        %s732 = smul.addr %s731, 16
        %s733 = smul.addr %s732, 4
        %s734 = scalar_lea.vmem %s10, %s733
        %p735 = pneg %p329
        %p736 = pneg %p326
        %p737 = scmp.lt.s32.totalorder %s41, 1
        %s738 = scalar_select %p737, %s41, 1
        %s739 = scalar_lea.vmem %s11, %s738
        %p740 = pneg %p355
        %p741 = pneg %p352
        %p742 = scmp.lt.s32.totalorder %s41, 1
        %s743 = scalar_select %p742, %s41, 1
        %s744 = scalar_lea.vmem %s12, %s743
        %p745 = pneg %p381
        %p746 = pneg %p378
        %p747 = scmp.lt.s32.totalorder %s41, 1
        %s748 = scalar_select %p747, %s41, 1
        %s749 = scalar_lea.vmem %s13, %s748
        %p750 = pneg %p407
        %p751 = pneg %p404
        %p752 = pneg %p428
        %p753 = pneg %p425
        %p754 = pneg %p449
        %p755 = pneg %p446
        %p756 = pneg %p475
        %p757 = pneg %p472
        %s758 = sand.u32 %s462, 1
        %s759 = scalar_lea.sflag [#allocation6], %s758
        %s760 = sand.u32 %s462, 1
        %s761 = smul.addr %s760, 8
        %s762 = scalar_lea.vmem [#allocation10], %s761
        %p763 = scmp.lt.s32.totalorder %s40, 1
        %s764 = scalar_select %p763, %s40, 1
        %s765 = scalar_lea.vmem %s1, %s764
        %p766 = scmp.lt.s32.totalorder %s41, 1
        %s767 = scalar_select %p766, %s41, 1
        %s768 = smul.addr %s767, 24
        %s769 = smul.addr %s768, 4
        %s770 = scalar_lea.vmem %s2, %s769
        %p771 = scmp.lt.s32.totalorder %s41, 1
        %s772 = scalar_select %p771, %s41, 1
        %s773 = smul.addr %s772, 4
        %s774 = scalar_lea.vmem %s3, %s773
        %p775 = scmp.lt.s32.totalorder %s41, 1
        %s776 = scalar_select %p775, %s41, 1
        %s777 = scalar_lea.vmem %s5, %s776
        %p778 = scmp.lt.s32.totalorder %s41, 1
        %s779 = scalar_select %p778, %s41, 1
        %s780 = scalar_lea.vmem %s6, %s779
        %p781 = scmp.lt.s32.totalorder %s41, 1
        %s782 = scalar_select %p781, %s41, 1
        %s783 = scalar_lea.vmem %s7, %s782
        %p784 = scmp.lt.s32.totalorder %s41, 1
        %s785 = scalar_select %p784, %s41, 1
        %s786 = scalar_lea.vmem %s9, %s785
        %p787 = scmp.lt.s32.totalorder %s41, 1
        %s788 = scalar_select %p787, %s41, 1
        %s789 = smul.addr %s788, 16
        %s790 = smul.addr %s789, 4
        %s791 = scalar_lea.vmem %s10, %s790
        %p792 = scmp.lt.s32.totalorder %s41, 1
        %s793 = scalar_select %p792, %s41, 1
        %s794 = scalar_lea.vmem %s11, %s793
        %p795 = scmp.lt.s32.totalorder %s41, 1
        %s796 = scalar_select %p795, %s41, 1
        %s797 = scalar_lea.vmem %s12, %s796
        %p798 = scmp.lt.s32.totalorder %s41, 1
        %s799 = scalar_select %p798, %s41, 1
        %s800 = scalar_lea.vmem %s13, %s799
        %p802 = scmp.eq.s32.totalorder %s41, 0
        // Predicated region
        $region97: #{tpu_custom_call.1} parent=83 // pred_check
          %p803 = pneg %p802
        $region98: #{tpu_custom_call.1} parent=83 // pred_check_branch
          %805 = sbr.rel (%p803) target = $region100
        $region99: #{tpu_custom_call.1} parent=83 // pred_region
          %v806 = vld [vmem:[%s645] sm:$0xff]
          %vm807 = vcmask 523264
          %808 = vst.msk [vmem:[#allocation2] sm:$0xff] %vm807, %v806
        $region100: #{tpu_custom_call.1} parent=83 // pred_fallthru
          _
        %v809 = vld [vmem:[#allocation2] sm:$0xff]
        %v810 = vpack.c.bf16 %v809, %v809
        %v811 = vld [vmem:[%s770] sm:$0xf]
        %v812 = vld [vmem:[%s770 + $0x4] sm:$0xf]
        %v813 = vld [vmem:[%s770 + $0x8] sm:$0xf]
        %v814 = vld [vmem:[%s770 + $0xc] sm:$0xf]
        %v815 = vld [vmem:[%s770 + $0x10] sm:$0xf]
        %v816 = vld [vmem:[%s770 + $0x14] sm:$0xf]
        %v817 = vld [vmem:[%s770 + $0x18] sm:$0xf]
        %v818 = vld [vmem:[%s770 + $0x1c] sm:$0xf]
        %v819 = vld [vmem:[%s774] sm:$0x1]
        %v820 = vperm.slane %v819, 0
        %v829 = vunpack.c.l.b16 %v811
        %v830 = vunpack.c.l.b16 %v812
        %v831 = vunpack.c.l.b16 %v813
        %v832 = vunpack.c.l.b16 %v814
        %v833 = vunpack.c.l.b16 %v815
        %v834 = vunpack.c.l.b16 %v816
        %v835 = vunpack.c.l.b16 %v817
        %v836 = vunpack.c.l.b16 %v818
        %v837 = vpack.c.b16 %v830, %v829
        %v838 = vpack.c.b16 %v832, %v831
        %v839 = vpack.c.b16 %v834, %v833
        %v840 = vpack.c.b16 %v836, %v835
        %vm845 = vcmask 523264
        %v847 = vsel %vm845, %v810, 0
        %849 = vmatpush.bf16.msra.mxu0 0
        %850 = vmatpush.bf16.msra.mxu0 0
        %851 = vmatpush.bf16.msra.mxu0 0
        %852 = vmatpush.bf16.msra.mxu0 0
        %853 = vmatpush.bf16.msra.mxu0 %v840
        %854 = vmatpush.bf16.msra.mxu0 %v839
        %855 = vmatpush.bf16.msra.mxu0 %v838
        %856 = vmatpush.bf16.msra.mxu0 %v837
        %857 = vmatmul.bf16.gmra.mxu0 %v847
        %v858 = vpop.f32.mrf.mxu0
        %v859 = vadd.f32 %v820, %v858
        %v860 = vpop.f32.mrf.mxu0
        %861 = vdwg.mxu0
        %s862 = scalar_lea.vmem %s770, 32
        %v863 = vld [vmem:[%s862] sm:$0xf]
        %v864 = vld [vmem:[%s862 + $0x4] sm:$0xf]
        %v865 = vld [vmem:[%s862 + $0x8] sm:$0xf]
        %v866 = vld [vmem:[%s862 + $0xc] sm:$0xf]
        %v867 = vld [vmem:[%s862 + $0x10] sm:$0xf]
        %v868 = vld [vmem:[%s862 + $0x14] sm:$0xf]
        %v869 = vld [vmem:[%s862 + $0x18] sm:$0xf]
        %v870 = vld [vmem:[%s862 + $0x1c] sm:$0xf]
        %v871 = vld [vmem:[%s774 + $0x1] sm:$0x1]
        %v872 = vperm.slane %v871, 0
        %v881 = vunpack.c.l.b16 %v863
        %v882 = vunpack.c.l.b16 %v864
        %v883 = vunpack.c.l.b16 %v865
        %v884 = vunpack.c.l.b16 %v866
        %v885 = vunpack.c.l.b16 %v867
        %v886 = vunpack.c.l.b16 %v868
        %v887 = vunpack.c.l.b16 %v869
        %v888 = vunpack.c.l.b16 %v870
        %v889 = vpack.c.b16 %v882, %v881
        %v890 = vpack.c.b16 %v884, %v883
        %v891 = vpack.c.b16 %v886, %v885
        %v892 = vpack.c.b16 %v888, %v887
        %897 = vmatpush.bf16.msra.mxu0 0
        %898 = vmatpush.bf16.msra.mxu0 0
        %899 = vmatpush.bf16.msra.mxu0 0
        %900 = vmatpush.bf16.msra.mxu0 0
        %901 = vmatpush.bf16.msra.mxu0 %v892
        %902 = vmatpush.bf16.msra.mxu0 %v891
        %903 = vmatpush.bf16.msra.mxu0 %v890
        %904 = vmatpush.bf16.msra.mxu0 %v889
        %905 = vmatmul.bf16.gmra.mxu0 %v847
        %v906 = vpop.f32.mrf.mxu0
        %v907 = vadd.f32 %v872, %v906
        %v908 = vpop.f32.mrf.mxu0
        %909 = vdwg.mxu0
        %s910 = scalar_lea.vmem %s770, 64
        %v911 = vld [vmem:[%s910] sm:$0xf]
        %v912 = vld [vmem:[%s910 + $0x4] sm:$0xf]
        %v913 = vld [vmem:[%s910 + $0x8] sm:$0xf]
        %v914 = vld [vmem:[%s910 + $0xc] sm:$0xf]
        %v915 = vld [vmem:[%s910 + $0x10] sm:$0xf]
        %v916 = vld [vmem:[%s910 + $0x14] sm:$0xf]
        %v917 = vld [vmem:[%s910 + $0x18] sm:$0xf]
        %v918 = vld [vmem:[%s910 + $0x1c] sm:$0xf]
        %v919 = vld [vmem:[%s774 + $0x2] sm:$0x1]
        %v920 = vperm.slane %v919, 0
        %v929 = vunpack.c.l.b16 %v911
        %v930 = vunpack.c.l.b16 %v912
        %v931 = vunpack.c.l.b16 %v913
        %v932 = vunpack.c.l.b16 %v914
        %v933 = vunpack.c.l.b16 %v915
        %v934 = vunpack.c.l.b16 %v916
        %v935 = vunpack.c.l.b16 %v917
        %v936 = vunpack.c.l.b16 %v918
        %v937 = vpack.c.b16 %v930, %v929
        %v938 = vpack.c.b16 %v932, %v931
        %v939 = vpack.c.b16 %v934, %v933
        %v940 = vpack.c.b16 %v936, %v935
        %945 = vmatpush.bf16.msra.mxu0 0
        %946 = vmatpush.bf16.msra.mxu0 0
        %947 = vmatpush.bf16.msra.mxu0 0
        %948 = vmatpush.bf16.msra.mxu0 0
        %949 = vmatpush.bf16.msra.mxu0 %v940
        %950 = vmatpush.bf16.msra.mxu0 %v939
        %951 = vmatpush.bf16.msra.mxu0 %v938
        %952 = vmatpush.bf16.msra.mxu0 %v937
        %953 = vmatmul.bf16.gmra.mxu0 %v847
        %v954 = vpop.f32.mrf.mxu0
        %v955 = vadd.f32 %v920, %v954
        %v956 = vpop.f32.mrf.mxu0
        %957 = vdwg.mxu0
        %v958 = vmul.f32 %v859, 0.25
        %v959 = vpack.c.bf16 %v958, %v958
        %v960 = vpack.c.bf16 %v907, %v907
        %v961 = vpack.c.bf16 %v955, %v955
        %v962 = vld [vmem:[%s765] sm:$0x1]
        %v964 = vperm.slane %v962, 0
        %vm966 = vcmask 130048
        %v968 = vsel %vm966, %v959, 0
        %v971 = vsel %vm966, %v960, 0
        %973 = vmatpush.bf16.xpose.msra.mxu0 0
        %974 = vmatpush.bf16.xpose.msra.mxu0 0
        %975 = vmatpush.bf16.xpose.msra.mxu0 0
        %976 = vmatpush.bf16.xpose.msra.mxu0 0
        %977 = vmatpush.bf16.xpose.msra.mxu0 0
        %978 = vmatpush.bf16.xpose.msra.mxu0 0
        %979 = vmatpush.bf16.xpose.msra.mxu0 0
        %980 = vmatpush.bf16.xpose.msra.mxu0 %v971
        %981 = vmatmul.bf16.gmra.mxu0 %v968
        %v982 = vpop.f32.mrf.mxu0
        %v983 = vadd.f32 %v964, %v982
        %v984 = vpop.f32.mrf.mxu0
        %985 = vdwg.mxu0
        %vm986 = vcmask 64512
        %v987 = vsel %vm986, %v983, -inf
        %988 = vmax.xlane.f32.xlu0 %v987
        %v989 = vpop.xlane.xlu0 %988
        %v990 = vsub.f32 %v983, %v989
        %v991 = vmul.f32 %v990, 1.442695
        %v992 = vpow.pop %v991
        %v993 = vsel %vm986, %v992, 0.0
        %994 = vadd.xlane.f32.xlu0 %v993
        %v995 = vpop.xlane.xlu0 %994
        %v996 = vrcp.pop %v995
        %v997 = vmul.f32 %v992, %v996
        %v998 = vpack.c.bf16 %v997, %v997
        %v1000 = vsel %vm986, %v998, 0
        %vm1002 = vcmask 1043456
        %v1004 = vsel %vm1002, %v961, 0
        %1006 = vmatpush.bf16.msra.mxu0 0
        %1007 = vmatpush.bf16.msra.mxu0 0
        %1008 = vmatpush.bf16.msra.mxu0 0
        %1009 = vmatpush.bf16.msra.mxu0 0
        %1010 = vmatpush.bf16.msra.mxu0 0
        %1011 = vmatpush.bf16.msra.mxu0 0
        %1012 = vmatpush.bf16.msra.mxu0 0
        %1013 = vmatpush.bf16.msra.mxu0 %v1004
        %1014 = vmatmul.bf16.gmra.mxu0 %v1000
        %v1015 = vpop.f32.mrf.mxu0
        %v1016 = vadd.f32 0.0, %v1015
        %v1017 = vpop.f32.mrf.mxu0
        %1018 = vdwg.mxu0
        %1019 = vst.msk [vmem:[#allocation3] sm:$0xff] %vm966, %v1016
        %v1021 = vunpack.c.l.b16 %v959
        %v1022 = vpack.c.b16 %v1021, %v1021
        %1023 = vrot.lane.b32.xlu0 %v1022, 112
        %v1024 = vpop.permute.xlu0 %1023
        %v1026 = vunpack.c.l.b16 %v960
        %v1027 = vpack.c.b16 %v1026, %v1026
        %1028 = vrot.lane.b32.xlu0 %v1027, 112
        %v1029 = vpop.permute.xlu0 %1028
        %v1031 = vsel %vm966, %v1024, 0
        %v1034 = vsel %vm966, %v1029, 0
        %1036 = vmatpush.bf16.xpose.msra.mxu0 0
        %1037 = vmatpush.bf16.xpose.msra.mxu0 0
        %1038 = vmatpush.bf16.xpose.msra.mxu0 0
        %1039 = vmatpush.bf16.xpose.msra.mxu0 0
        %1040 = vmatpush.bf16.xpose.msra.mxu0 0
        %1041 = vmatpush.bf16.xpose.msra.mxu0 0
        %1042 = vmatpush.bf16.xpose.msra.mxu0 0
        %1043 = vmatpush.bf16.xpose.msra.mxu0 %v1034
        %1044 = vmatmul.bf16.gmra.mxu0 %v1031
        %v1045 = vpop.f32.mrf.mxu0
        %v1046 = vadd.f32 %v964, %v1045
        %v1047 = vpop.f32.mrf.mxu0
        %1048 = vdwg.mxu0
        %v1049 = vsel %vm986, %v1046, -inf
        %1050 = vmax.xlane.f32.xlu0 %v1049
        %v1051 = vpop.xlane.xlu0 %1050
        %v1052 = vsub.f32 %v1046, %v1051
        %v1053 = vmul.f32 %v1052, 1.442695
        %v1054 = vpow.pop %v1053
        %v1055 = vsel %vm986, %v1054, 0.0
        %1056 = vadd.xlane.f32.xlu0 %v1055
        %v1057 = vpop.xlane.xlu0 %1056
        %v1058 = vrcp.pop %v1057
        %v1059 = vmul.f32 %v1054, %v1058
        %v1060 = vpack.c.bf16 %v1059, %v1059
        %v1062 = vunpack.c.l.b16 %v961
        %v1063 = vpack.c.b16 %v1062, %v1062
        %1064 = vrot.lane.b32.xlu0 %v1063, 112
        %v1065 = vpop.permute.xlu0 %1064
        %v1067 = vsel %vm986, %v1060, 0
        %v1070 = vsel %vm1002, %v1065, 0
        %1072 = vmatpush.bf16.msra.mxu0 0
        %1073 = vmatpush.bf16.msra.mxu0 0
        %1074 = vmatpush.bf16.msra.mxu0 0
        %1075 = vmatpush.bf16.msra.mxu0 0
        %1076 = vmatpush.bf16.msra.mxu0 0
        %1077 = vmatpush.bf16.msra.mxu0 0
        %1078 = vmatpush.bf16.msra.mxu0 0
        %1079 = vmatpush.bf16.msra.mxu0 %v1070
        %1080 = vmatmul.bf16.gmra.mxu0 %v1067
        %v1081 = vpop.f32.mrf.mxu0
        %v1082 = vadd.f32 0.0, %v1081
        %v1083 = vpop.f32.mrf.mxu0
        %1084 = vdwg.mxu0
        %1086 = vrot.lane.b32.xlu0 %v1082, 16
        %v1087 = vpop.permute.xlu0 %1086
        %vm1089 = vcmask 261248
        %1090 = vst.msk [vmem:[#allocation3] sm:$0xff] %vm1089, %v1087
        %1091 = vrot.lane.b32.xlu0 %v1022, 96
        %v1092 = vpop.permute.xlu0 %1091
        %1093 = vrot.lane.b32.xlu0 %v1027, 96
        %v1094 = vpop.permute.xlu0 %1093
        %v1096 = vsel %vm966, %v1092, 0
        %v1099 = vsel %vm966, %v1094, 0
        %1101 = vmatpush.bf16.xpose.msra.mxu0 0
        %1102 = vmatpush.bf16.xpose.msra.mxu0 0
        %1103 = vmatpush.bf16.xpose.msra.mxu0 0
        %1104 = vmatpush.bf16.xpose.msra.mxu0 0
        %1105 = vmatpush.bf16.xpose.msra.mxu0 0
        %1106 = vmatpush.bf16.xpose.msra.mxu0 0
        %1107 = vmatpush.bf16.xpose.msra.mxu0 0
        %1108 = vmatpush.bf16.xpose.msra.mxu0 %v1099
        %1109 = vmatmul.bf16.gmra.mxu0 %v1096
        %v1110 = vpop.f32.mrf.mxu0
        %v1111 = vadd.f32 %v964, %v1110
        %v1112 = vpop.f32.mrf.mxu0
        %1113 = vdwg.mxu0
        %v1114 = vsel %vm986, %v1111, -inf
        %1115 = vmax.xlane.f32.xlu0 %v1114
        %v1116 = vpop.xlane.xlu0 %1115
        %v1117 = vsub.f32 %v1111, %v1116
        %v1118 = vmul.f32 %v1117, 1.442695
        %v1119 = vpow.pop %v1118
        %v1120 = vsel %vm986, %v1119, 0.0
        %1121 = vadd.xlane.f32.xlu0 %v1120
        %v1122 = vpop.xlane.xlu0 %1121
        %v1123 = vrcp.pop %v1122
        %v1124 = vmul.f32 %v1119, %v1123
        %v1125 = vpack.c.bf16 %v1124, %v1124
        %1126 = vrot.lane.b32.xlu0 %v1063, 96
        %v1127 = vpop.permute.xlu0 %1126
        %v1129 = vsel %vm986, %v1125, 0
        %v1132 = vsel %vm1002, %v1127, 0
        %1134 = vmatpush.bf16.msra.mxu0 0
        %1135 = vmatpush.bf16.msra.mxu0 0
        %1136 = vmatpush.bf16.msra.mxu0 0
        %1137 = vmatpush.bf16.msra.mxu0 0
        %1138 = vmatpush.bf16.msra.mxu0 0
        %1139 = vmatpush.bf16.msra.mxu0 0
        %1140 = vmatpush.bf16.msra.mxu0 0
        %1141 = vmatpush.bf16.msra.mxu0 %v1132
        %1142 = vmatmul.bf16.gmra.mxu0 %v1129
        %v1143 = vpop.f32.mrf.mxu0
        %v1144 = vadd.f32 0.0, %v1143
        %v1145 = vpop.f32.mrf.mxu0
        %1146 = vdwg.mxu0
        %1148 = vrot.lane.b32.xlu0 %v1144, 32
        %v1149 = vpop.permute.xlu0 %1148
        %vm1151 = vcmask 392448
        %1152 = vst.msk [vmem:[#allocation3] sm:$0xff] %vm1151, %v1149
        %1153 = vrot.lane.b32.xlu0 %v1022, 80
        %v1154 = vpop.permute.xlu0 %1153
        %1155 = vrot.lane.b32.xlu0 %v1027, 80
        %v1156 = vpop.permute.xlu0 %1155
        %v1158 = vsel %vm966, %v1154, 0
        %v1161 = vsel %vm966, %v1156, 0
        %1163 = vmatpush.bf16.xpose.msra.mxu0 0
        %1164 = vmatpush.bf16.xpose.msra.mxu0 0
        %1165 = vmatpush.bf16.xpose.msra.mxu0 0
        %1166 = vmatpush.bf16.xpose.msra.mxu0 0
        %1167 = vmatpush.bf16.xpose.msra.mxu0 0
        %1168 = vmatpush.bf16.xpose.msra.mxu0 0
        %1169 = vmatpush.bf16.xpose.msra.mxu0 0
        %1170 = vmatpush.bf16.xpose.msra.mxu0 %v1161
        %1171 = vmatmul.bf16.gmra.mxu0 %v1158
        %v1172 = vpop.f32.mrf.mxu0
        %v1173 = vadd.f32 %v964, %v1172
        %v1174 = vpop.f32.mrf.mxu0
        %1175 = vdwg.mxu0
        %v1176 = vsel %vm986, %v1173, -inf
        %1177 = vmax.xlane.f32.xlu0 %v1176
        %v1178 = vpop.xlane.xlu0 %1177
        %v1179 = vsub.f32 %v1173, %v1178
        %v1180 = vmul.f32 %v1179, 1.442695
        %v1181 = vpow.pop %v1180
        %v1182 = vsel %vm986, %v1181, 0.0
        %1183 = vadd.xlane.f32.xlu0 %v1182
        %v1184 = vpop.xlane.xlu0 %1183
        %v1185 = vrcp.pop %v1184
        %v1186 = vmul.f32 %v1181, %v1185
        %v1187 = vpack.c.bf16 %v1186, %v1186
        %1188 = vrot.lane.b32.xlu0 %v1063, 80
        %v1189 = vpop.permute.xlu0 %1188
        %v1191 = vsel %vm986, %v1187, 0
        %v1194 = vsel %vm1002, %v1189, 0
        %1196 = vmatpush.bf16.msra.mxu0 0
        %1197 = vmatpush.bf16.msra.mxu0 0
        %1198 = vmatpush.bf16.msra.mxu0 0
        %1199 = vmatpush.bf16.msra.mxu0 0
        %1200 = vmatpush.bf16.msra.mxu0 0
        %1201 = vmatpush.bf16.msra.mxu0 0
        %1202 = vmatpush.bf16.msra.mxu0 0
        %1203 = vmatpush.bf16.msra.mxu0 %v1194
        %1204 = vmatmul.bf16.gmra.mxu0 %v1191
        %v1205 = vpop.f32.mrf.mxu0
        %v1206 = vadd.f32 0.0, %v1205
        %v1207 = vpop.f32.mrf.mxu0
        %1208 = vdwg.mxu0
        %1210 = vrot.lane.b32.xlu0 %v1206, 48
        %v1211 = vpop.permute.xlu0 %1210
        %vm1213 = vcmask 523648
        %1214 = vst.msk [vmem:[#allocation3] sm:$0xff] %vm1213, %v1211
        %v1215 = vld [vmem:[#allocation3] sm:$0xff]
        %v1216 = vpack.c.bf16 %v1215, %v1215
        %v1217 = vld [vmem:[%s655] sm:$0xf]
        %v1218 = vld [vmem:[%s655 + $0x4] sm:$0xf]
        %v1219 = vld [vmem:[%s655 + $0x8] sm:$0xf]
        %v1220 = vld [vmem:[%s655 + $0xc] sm:$0xf]
        %v1221 = vld [vmem:[%s655 + $0x10] sm:$0xf]
        %v1222 = vld [vmem:[%s655 + $0x14] sm:$0xf]
        %v1223 = vld [vmem:[%s655 + $0x18] sm:$0xf]
        %v1224 = vld [vmem:[%s655 + $0x1c] sm:$0xf]
        %v1225 = vld [vmem:[%s777] sm:$0x1]
        %v1227 = vperm.slane %v1225, 0
        %v1237 = vunpack.c.l.b16 %v1217
        %v1238 = vunpack.c.l.b16 %v1218
        %v1239 = vunpack.c.l.b16 %v1219
        %v1240 = vunpack.c.l.b16 %v1220
        %v1241 = vunpack.c.l.b16 %v1221
        %v1242 = vunpack.c.l.b16 %v1222
        %v1243 = vunpack.c.l.b16 %v1223
        %v1244 = vunpack.c.l.b16 %v1224
        %v1245 = vpack.c.b16 %v1238, %v1237
        %v1246 = vpack.c.b16 %v1240, %v1239
        %v1247 = vpack.c.b16 %v1242, %v1241
        %v1248 = vpack.c.b16 %v1244, %v1243
        %v1254 = vsel %vm845, %v1216, 0
        %1256 = vmatpush.bf16.msra.mxu0 0
        %1257 = vmatpush.bf16.msra.mxu0 0
        %1258 = vmatpush.bf16.msra.mxu0 0
        %1259 = vmatpush.bf16.msra.mxu0 0
        %1260 = vmatpush.bf16.msra.mxu0 %v1248
        %1261 = vmatpush.bf16.msra.mxu0 %v1247
        %1262 = vmatpush.bf16.msra.mxu0 %v1246
        %1263 = vmatpush.bf16.msra.mxu0 %v1245
        %1264 = vmatmul.bf16.gmra.mxu0 %v1254
        %v1265 = vpop.f32.mrf.mxu0
        %v1266 = vadd.f32 %v1227, %v1265
        %v1267 = vpop.f32.mrf.mxu0
        %1268 = vdwg.mxu0
        %v1269 = vadd.f32 %v809, %v1266
        %v1270 = vld [vmem:[%s780] sm:$0x1]
        %v1271 = vld [vmem:[%s783] sm:$0x1]
        %v1272 = vsel %vm845, %v1269, 0.0
        %1273 = vadd.xlane.f32.xlu0 %v1272
        %v1274 = vpop.xlane.xlu0 %1273
        %v1275 = vrcp.pop 64.0
        %v1276 = vmul.f32 64.0, %v1275
        %v1277 = vsub.f32 1.0, %v1276
        %v1278 = vmul.f32 %v1275, %v1277
        %v1279 = vadd.f32 %v1275, %v1278
        %vm1280 = vweird.f32 %v1275
        %v1281 = vsel %vm1280, %v1275, %v1279
        %v1282 = vmul.f32 %v1274, %v1281
        %v1283 = vsub.f32 %v1269, %v1282
        %v1284 = vmul.f32 %v1283, %v1283
        %v1285 = vsel %vm845, %v1284, 0.0
        %1286 = vadd.xlane.f32.xlu0 %v1285
        %v1287 = vpop.xlane.xlu0 %1286
        %v1288 = vmul.f32 %v1287, %v1281
        %v1289 = vadd.f32 %v1288, 1e-05
        %v1290 = vrsqrt.pop %v1289
        %v1291 = vmul.f32 %v1290, %v1289
        %v1292 = vmul.f32 %v1291, %v1290
        %v1293 = vmul.f32 0.5, %v1292
        %v1294 = vsub.f32 1.5, %v1293
        %v1295 = vmul.f32 %v1290, %v1294
        %vm1296 = vweird.f32 %v1289
        %vm1297 = vweird.f32 %v1290
        %vm1298 = vmor %vm1296, %vm1297
        %v1299 = vsel %vm1298, %v1290, %v1295
        %v1300 = vmul.f32 %v1283, %v1299
        %v1302 = vperm.slane %v1270, 0
        %v1304 = vmul.f32 %v1300, %v1302
        %v1306 = vperm.slane %v1271, 0
        %v1308 = vadd.f32 %v1304, %v1306
        %v1309 = vpack.c.bf16 %v1308, %v1308
        %v1310 = vld [vmem:[%s665] sm:$0xf]
        %v1311 = vld [vmem:[%s665 + $0x4] sm:$0xf]
        %v1312 = vld [vmem:[%s665 + $0x8] sm:$0xf]
        %v1313 = vld [vmem:[%s665 + $0xc] sm:$0xf]
        %v1314 = vld [vmem:[%s665 + $0x10] sm:$0xf]
        %v1315 = vld [vmem:[%s665 + $0x14] sm:$0xf]
        %v1316 = vld [vmem:[%s665 + $0x18] sm:$0xf]
        %v1317 = vld [vmem:[%s665 + $0x1c] sm:$0xf]
        %v1318 = vld [vmem:[%s786] sm:$0x1]
        %v1320 = vperm.slane %v1318, 0
        %v1330 = vunpack.c.l.b16 %v1310
        %v1331 = vunpack.c.l.b16 %v1311
        %v1332 = vunpack.c.l.b16 %v1312
        %v1333 = vunpack.c.l.b16 %v1313
        %v1334 = vunpack.c.l.b16 %v1314
        %v1335 = vunpack.c.l.b16 %v1315
        %v1336 = vunpack.c.l.b16 %v1316
        %v1337 = vunpack.c.l.b16 %v1317
        %v1338 = vpack.c.b16 %v1331, %v1330
        %v1339 = vpack.c.b16 %v1333, %v1332
        %v1340 = vpack.c.b16 %v1335, %v1334
        %v1341 = vpack.c.b16 %v1337, %v1336
        %v1347 = vsel %vm845, %v1309, 0
        %1349 = vmatpush.bf16.msra.mxu0 0
        %1350 = vmatpush.bf16.msra.mxu0 0
        %1351 = vmatpush.bf16.msra.mxu0 0
        %1352 = vmatpush.bf16.msra.mxu0 0
        %1353 = vmatpush.bf16.msra.mxu0 %v1341
        %1354 = vmatpush.bf16.msra.mxu0 %v1340
        %1355 = vmatpush.bf16.msra.mxu0 %v1339
        %1356 = vmatpush.bf16.msra.mxu0 %v1338
        %1357 = vmatmul.bf16.gmra.mxu0 %v1347
        %v1358 = vpop.f32.mrf.mxu0
        %v1359 = vadd.f32 %v1320, %v1358
        %v1360 = vpop.f32.mrf.mxu0
        %1361 = vdwg.mxu0
        %v1362 = vmax.f32 %v1359, 0.0
        %v1363 = vpack.c.bf16 %v1362, %v1362
        %v1364 = vld [vmem:[%s791] sm:$0xf]
        %v1365 = vld [vmem:[%s791 + $0x4] sm:$0xf]
        %v1366 = vld [vmem:[%s791 + $0x8] sm:$0xf]
        %v1367 = vld [vmem:[%s791 + $0xc] sm:$0xf]
        %v1368 = vld [vmem:[%s791 + $0x10] sm:$0xf]
        %v1369 = vld [vmem:[%s791 + $0x14] sm:$0xf]
        %v1370 = vld [vmem:[%s791 + $0x18] sm:$0xf]
        %v1371 = vld [vmem:[%s791 + $0x1c] sm:$0xf]
        %v1372 = vld [vmem:[%s791 + $0x20] sm:$0xf]
        %v1373 = vld [vmem:[%s791 + $0x24] sm:$0xf]
        %v1374 = vld [vmem:[%s791 + $0x28] sm:$0xf]
        %v1375 = vld [vmem:[%s791 + $0x2c] sm:$0xf]
        %v1376 = vld [vmem:[%s791 + $0x30] sm:$0xf]
        %v1377 = vld [vmem:[%s791 + $0x34] sm:$0xf]
        %v1378 = vld [vmem:[%s791 + $0x38] sm:$0xf]
        %v1379 = vld [vmem:[%s791 + $0x3c] sm:$0xf]
        %v1380 = vld [vmem:[%s794] sm:$0x1]
        %v1382 = vperm.slane %v1380, 0
        %v1400 = vunpack.c.l.b16 %v1364
        %v1401 = vunpack.c.l.b16 %v1365
        %v1402 = vunpack.c.l.b16 %v1366
        %v1403 = vunpack.c.l.b16 %v1367
        %v1404 = vunpack.c.l.b16 %v1368
        %v1405 = vunpack.c.l.b16 %v1369
        %v1406 = vunpack.c.l.b16 %v1370
        %v1407 = vunpack.c.l.b16 %v1371
        %v1408 = vunpack.c.l.b16 %v1372
        %v1409 = vunpack.c.l.b16 %v1373
        %v1410 = vunpack.c.l.b16 %v1374
        %v1411 = vunpack.c.l.b16 %v1375
        %v1412 = vunpack.c.l.b16 %v1376
        %v1413 = vunpack.c.l.b16 %v1377
        %v1414 = vunpack.c.l.b16 %v1378
        %v1415 = vunpack.c.l.b16 %v1379
        %v1416 = vpack.c.b16 %v1401, %v1400
        %v1417 = vpack.c.b16 %v1403, %v1402
        %v1418 = vpack.c.b16 %v1405, %v1404
        %v1419 = vpack.c.b16 %v1407, %v1406
        %v1420 = vpack.c.b16 %v1409, %v1408
        %v1421 = vpack.c.b16 %v1411, %v1410
        %v1422 = vpack.c.b16 %v1413, %v1412
        %v1423 = vpack.c.b16 %v1415, %v1414
        %1432 = vmatpush.bf16.msra.mxu0 %v1423
        %1433 = vmatpush.bf16.msra.mxu0 %v1422
        %1434 = vmatpush.bf16.msra.mxu0 %v1421
        %1435 = vmatpush.bf16.msra.mxu0 %v1420
        %1436 = vmatpush.bf16.msra.mxu0 %v1419
        %1437 = vmatpush.bf16.msra.mxu0 %v1418
        %1438 = vmatpush.bf16.msra.mxu0 %v1417
        %1439 = vmatpush.bf16.msra.mxu0 %v1416
        %1440 = vmatmul.bf16.gmra.mxu0 %v1363
        %v1441 = vpop.f32.mrf.mxu0
        %v1442 = vadd.f32 %v1382, %v1441
        %v1443 = vpop.f32.mrf.mxu0
        %1444 = vdwg.mxu0
        %v1445 = vadd.f32 %v1308, %v1442
        %v1446 = vld [vmem:[%s797] sm:$0x1]
        %v1447 = vld [vmem:[%s800] sm:$0x1]
        %v1448 = vsel %vm845, %v1445, 0.0
        %1449 = vadd.xlane.f32.xlu0 %v1448
        %v1450 = vpop.xlane.xlu0 %1449
        %v1451 = vmul.f32 %v1450, %v1281
        %v1452 = vsub.f32 %v1445, %v1451
        %v1453 = vmul.f32 %v1452, %v1452
        %v1454 = vsel %vm845, %v1453, 0.0
        %1455 = vadd.xlane.f32.xlu0 %v1454
        %v1456 = vpop.xlane.xlu0 %1455
        %v1457 = vmul.f32 %v1456, %v1281
        %v1458 = vadd.f32 %v1457, 1e-05
        %v1459 = vrsqrt.pop %v1458
        %v1460 = vmul.f32 %v1459, %v1458
        %v1461 = vmul.f32 %v1460, %v1459
        %v1462 = vmul.f32 0.5, %v1461
        %v1463 = vsub.f32 1.5, %v1462
        %v1464 = vmul.f32 %v1459, %v1463
        %vm1465 = vweird.f32 %v1458
        %vm1466 = vweird.f32 %v1459
        %vm1467 = vmor %vm1465, %vm1466
        %v1468 = vsel %vm1467, %v1459, %v1464
        %v1469 = vmul.f32 %v1452, %v1468
        %v1471 = vperm.slane %v1446, 0
        %v1473 = vmul.f32 %v1469, %v1471
        %v1475 = vperm.slane %v1447, 0
        %v1477 = vadd.f32 %v1473, %v1475
        %1478 = vst.msk [vmem:[#allocation2] sm:$0xff] %vm845, %v1477
        %p1479 = scmp.eq.s32.totalorder %s41, 1
        // Predicated region
        $region101: #{tpu_custom_call.1} parent=83 // pred_check
          %p1480 = pneg %p1479
        $region102: #{tpu_custom_call.1} parent=83 // pred_check_branch
          %1482 = sbr.rel (%p1480) target = $region104
        $region103: #{tpu_custom_call.1} parent=83 // pred_region
          %v1483 = vld [vmem:[%s14] sm:$0x1]
          %v1484 = vld [vmem:[%s15] sm:$0x1]
          %v1485 = vsel %vm845, %v1477, 0.0
          %1486 = vadd.xlane.f32.xlu0 %v1485
          %v1487 = vpop.xlane.xlu0 %1486
          %v1488 = vmul.f32 %v1487, %v1281
          %v1489 = vsub.f32 %v1477, %v1488
          %v1490 = vmul.f32 %v1489, %v1489
          %v1491 = vsel %vm845, %v1490, 0.0
          %1492 = vadd.xlane.f32.xlu0 %v1491
          %v1493 = vpop.xlane.xlu0 %1492
          %v1494 = vmul.f32 %v1493, %v1281
          %v1495 = vadd.f32 %v1494, 1e-05
          %v1496 = vrsqrt.pop %v1495
          %v1497 = vmul.f32 %v1496, %v1495
          %v1498 = vmul.f32 %v1497, %v1496
          %v1499 = vmul.f32 0.5, %v1498
          %v1500 = vsub.f32 1.5, %v1499
          %v1501 = vmul.f32 %v1496, %v1500
          %vm1502 = vweird.f32 %v1495
          %vm1503 = vweird.f32 %v1496
          %vm1504 = vmor %vm1502, %vm1503
          %v1505 = vsel %vm1504, %v1496, %v1501
          %v1506 = vmul.f32 %v1489, %v1505
          %v1508 = vperm.slane %v1483, 0
          %v1510 = vmul.f32 %v1506, %v1508
          %v1512 = vperm.slane %v1484, 0
          %v1514 = vadd.f32 %v1510, %v1512
          %1515 = vst.msk [vmem:[%s762] sm:$0xff] %vm845, %v1514
        $region104: #{tpu_custom_call.1} parent=83 // pred_fallthru
          _
        %s1516 = sand.u32 %s462, 1
        %s1517 = scalar_lea.sflag [#allocation6], %s1516
        %s1518 = sand.u32 %s462, 1
        %s1519 = smul.addr %s1518, 8
        %s1520 = scalar_lea.vmem [#allocation10], %s1519
        // Predicated region
        $region105: #{tpu_custom_call.1} parent=83 // pred_check
          %p1521 = pneg %p472
        $region106: #{tpu_custom_call.1} parent=83 // pred_check_branch
          %1523 = sbr.rel (%p1521) target = $region108
        $region107: #{tpu_custom_call.1} parent=83 // pred_region
          %1525 = vsyncadd %s1517, 0
          %s1526 = smul.addr %s40, 8
          %s1527 = scalar_lea.hbm %s16, %s1526
          %s1529 = sshll.u32 %s1520, 4
          %s1530 = int_to_ptr.vmem [resolvable:$true] %s1529
          %s1531 = sshll.u32 %s1527, 4
          %s1532 = int_to_ptr.hbm [resolvable:$true] %s1531
          %1534 = dma.vmem_to_hbm [thread:$0]  %s1530, 128, %s1532, %s1517
        $region108: #{tpu_custom_call.1} parent=83 // pred_fallthru
          _
      $region84: #{tpu_custom_call.1} parent=5 // pred_fallthru
        _
      %p1535 = scmp.le.s32.totalorder 2, %s31
      // Predicated region
      $region109: #{tpu_custom_call.1} parent=5 // pred_check
        %p1536 = pneg %p1535
      $region110: #{tpu_custom_call.1} parent=5 // pred_check_branch
        %1538 = sbr.rel (%p1536) target = $region112
      $region111: #{tpu_custom_call.1} parent=5 // pred_region
        %s1539 = ssub.s32 %s31, 2
        // Predicated region
        $region113: #{tpu_custom_call.1} parent=111 // pred_check
          %p1540 = pneg %p478
        $region114: #{tpu_custom_call.1} parent=111 // pred_check_branch
          %1542 = sbr.rel (%p1540) target = $region116
        $region115: #{tpu_custom_call.1} parent=111 // pred_region
          %s1543 = sand.u32 %s463, 1
          %s1544 = scalar_lea.sflag [#allocation6], %s1543
          %s1545 = sand.u32 %s463, 1
          %s1546 = smul.addr %s1545, 8
          %s1547 = scalar_lea.vmem [#allocation10], %s1546
          %1549 = dma.done %s1544, 128
        $region116: #{tpu_custom_call.1} parent=111 // pred_fallthru
          _
      $region112: #{tpu_custom_call.1} parent=5 // pred_fallthru
        _
    $region6: #{tpu_custom_call.1} parent=1 // loop_footer
      %s35 = sadd.s32 1, %s31
    $region7: #{tpu_custom_call.1} parent=1 // loop_footer_branch
      %30 = sbr.rel target = $region3
    $region8: #{tpu_custom_call.1} parent=1 // loop_exit
      _
    %1550 = vsyncpa [#allocation5], 1
    %s1551 = scalar_lea.sflag [#allocation5], 1
    %1552 = vsyncpa %s1551, 1
    %1553 = vsyncpa [#allocation8], 1
    %s1554 = scalar_lea.sflag [#allocation8], 1
    %1555 = vsyncpa %s1554, 1
    %1556 = vsyncpa [#allocation6], 1
    %s1557 = scalar_lea.sflag [#allocation6], 1
    %1558 = vsyncpa %s1557, 1

</llo_original>
